<compile_context>
chip_gen: v5e
topology: v5e:2x2
jax: 0.10.0
libtpu: 0.0.40
codegen_flags: <defaults>
</compile_context>

<pallas_src>
import math
from functools import partial

import jax
import jax.numpy as jnp
from jax import lax
from jax.experimental import pallas as pl
from jax.experimental.pallas import tpu as pltpu


def _softplus(x):
    # matches F.softplus(beta=1, threshold=20); the untaken branch is clamped
    # so it never produces inf (safe if this path is ever differentiated).
    return jnp.where(x > 20.0, x, jnp.log1p(jnp.exp(jnp.minimum(x, 20.0))))


def _round_up(x, m):
    return ((x + m - 1) // m) * m


def _cdiv(a, b):
    return -(-a // b)


# ----------------------------------------------------------------------------
# Kernel 1: fused projection.
#   delta = softplus(softplus(x @ (W_dt @ W_dtproj) + b_dtproj))   (module
#           softplus + the scan's delta_softplus, both hoisted here so no
#           transcendental sits on the scan's serial chain)
#   B     = x @ W_b        C = x @ W_c
# bf16 operands, f32 accumulation, three separate f32 outputs.
# ----------------------------------------------------------------------------
def _proj_kernel(x_ref, wd_ref, wb_ref, wc_ref, bd_ref, dt_ref, b_ref, c_ref):
    x = x_ref[...]                                            # (tm, C) bf16
    dacc = jnp.dot(x, wd_ref[...],
                   preferred_element_type=jnp.float32) + bd_ref[...]
    dt_ref[...] = _softplus(_softplus(dacc))
    b_ref[...] = jnp.dot(x, wb_ref[...], preferred_element_type=jnp.float32)
    c_ref[...] = jnp.dot(x, wc_ref[...], preferred_element_type=jnp.float32)


def _project(xf, w_delta, w_b, w_c, b_dt, tm=512):
    """xf:(M,C) bf16, w_delta:(C,D) bf16, w_b/w_c:(C,N) bf16, b_dt:(1,D) f32."""
    M, C = xf.shape
    D = w_delta.shape[1]
    N = w_b.shape[1]
    # >= 2 M-tiles whenever possible (keeps both v7x TensorCores busy).
    nt = max(2, _cdiv(M, tm)) if M > 8 else 1
    tm_eff = _round_up(_cdiv(M, nt), 8)
    M_pad = nt * tm_eff
    if M_pad != M:
        xf = jnp.pad(xf, ((0, M_pad - M), (0, 0)))
    delta, bs, cs = pl.pallas_call(
        _proj_kernel,
        out_shape=(jax.ShapeDtypeStruct((M_pad, D), jnp.float32),
                   jax.ShapeDtypeStruct((M_pad, N), jnp.float32),
                   jax.ShapeDtypeStruct((M_pad, N), jnp.float32)),
        grid=(nt,),
        in_specs=[
            pl.BlockSpec((tm_eff, C), lambda i: (i, 0)),
            pl.BlockSpec((C, D), lambda i: (0, 0)),
            pl.BlockSpec((C, N), lambda i: (0, 0)),
            pl.BlockSpec((C, N), lambda i: (0, 0)),
            pl.BlockSpec((1, D), lambda i: (0, 0)),
        ],
        out_specs=(pl.BlockSpec((tm_eff, D), lambda i: (i, 0)),
                   pl.BlockSpec((tm_eff, N), lambda i: (i, 0)),
                   pl.BlockSpec((tm_eff, N), lambda i: (i, 0))),
        compiler_params=pltpu.CompilerParams(
            dimension_semantics=("parallel",)),
    )(xf, w_delta, w_b, w_c, b_dt)
    if M_pad != M:
        delta, bs, cs = delta[:M], bs[:M], cs[:M]
    return delta, bs, cs


# ----------------------------------------------------------------------------
# Kernel 2: selective scan, chunked in time, tiled over (batch, channel, time)
# ----------------------------------------------------------------------------
def _scan_kernel(u_ref, dl_ref, b_ref, c_ref, a_ref, d_ref, y_ref, h_ref, *,
                 chunk):
    # u_ref, dl_ref, y_ref : (TL, TD)     b_ref, c_ref : (TL, N)
    # a_ref : (N, TD) (= A^T tile, A = -exp(A_logs))     d_ref : (1, TD)
    # h_ref : (N, TD) f32 scratch — SSM state, carried across the L grid axis.
    # NOTE: the carry relies on L being the innermost, sequentially iterated
    # ("arbitrary") grid axis — do not reorder grid axes without revisiting
    # the reset below.
    @pl.when(pl.program_id(2) == 0)
    def _():
        h_ref[...] = jnp.zeros_like(h_ref)

    A_t = a_ref[...]                                    # (N, TD)
    Dvec = d_ref[...]                                   # (1, TD)
    TL = u_ref.shape[0]
    T = chunk
    n_chunks = TL // T

    def chunk_body(ci, carry):
        off = pl.multiple_of(ci * T, T)
        # One block load per operand per chunk (not per timestep).
        # delta already has softplus applied twice in the projection kernel.
        d_chunk = dl_ref[pl.ds(off, T), :]              # (T, TD)
        u_chunk = u_ref[pl.ds(off, T), :]               # (T, TD)
        b_chunk = b_ref[pl.ds(off, T), :]               # (T, N)
        c_chunk = c_ref[pl.ds(off, T), :]               # (T, N)
        du = d_chunk * u_chunk                          # (T, TD)

        # Vectorized prologue (off the serial chain): all transcendentals and
        # outer products for the whole chunk at once.
        dA_all = jnp.exp(d_chunk[:, None, :] * A_t[None, :, :])   # (T, N, TD)
        dBu_all = b_chunk[:, :, None] * du[:, None, :]            # (T, N, TD)

        # Serial recurrence: exactly 1 multiply + 1 add per step on the chain.
        h = h_ref[...]
        hs = []
        for t in range(T):
            h = dA_all[t] * h + dBu_all[t]
            hs.append(h)
        h_ref[...] = h

        # Batched epilogue: one fused multiply, one N-reduce (off the chain),
        # and one lane-dense (T, TD) store per chunk.
        h_all = jnp.stack(hs, axis=0)                              # (T, N, TD)
        y = jnp.sum(c_chunk[:, :, None] * h_all, axis=1) + Dvec * u_chunk
        y_ref[pl.ds(off, T), :] = y
        return carry

    lax.fori_loop(0, n_chunks, chunk_body, 0)


def _selective_scan(u_t, dl_t, b_t, c_t, A_t, Ds, tl_cap=1024):
    B, L, Dp = u_t.shape                    # Dp is a multiple of 128
    N = A_t.shape[0]
    # Channel tile: 256 when d_inner allows it (longer DMA rows and two
    # independent recurrence chains per step), else 128.
    TD = 256 if (Dp % 256 == 0) else 128
    # Chunk length: keep the (T, N, TD) temporaries small enough that the
    # unrolled recurrence stays out of vreg-spill territory.
    T = max(1, min(8, 64 // max(1, N * (TD // 128))))
    # Time tile via cdiv + L padding — the chunked path always runs.
    ntl = max(1, _cdiv(L, tl_cap))
    TL = _round_up(_cdiv(L, ntl), 8)
    L_pad = ntl * TL
    if L_pad != L:
        padL = ((0, 0), (0, L_pad - L), (0, 0))
        u_t, dl_t, b_t, c_t = [jnp.pad(a, padL) for a in (u_t, dl_t, b_t, c_t)]

    grid = (B, Dp // TD, L_pad // TL)       # L innermost: sequential state carry
    y = pl.pallas_call(
        partial(_scan_kernel, chunk=T),
        out_shape=jax.ShapeDtypeStruct((B, L_pad, Dp), jnp.float32),
        grid=grid,
        in_specs=[
            pl.BlockSpec((None, TL, TD), lambda b, d, l: (b, l, d)),
            pl.BlockSpec((None, TL, TD), lambda b, d, l: (b, l, d)),
            pl.BlockSpec((None, TL, N), lambda b, d, l: (b, l, 0)),
            pl.BlockSpec((None, TL, N), lambda b, d, l: (b, l, 0)),
            pl.BlockSpec((N, TD), lambda b, d, l: (0, d)),
            pl.BlockSpec((1, TD), lambda b, d, l: (0, d)),
        ],
        out_specs=pl.BlockSpec((None, TL, TD), lambda b, d, l: (b, l, d)),
        scratch_shapes=[pltpu.VMEM((N, TD), jnp.float32)],
        compiler_params=pltpu.CompilerParams(
            dimension_semantics=("parallel", "parallel", "arbitrary")),
    )(u_t, dl_t, b_t, c_t, A_t, Ds)
    return y[:, :L, :] if L_pad != L else y


# ----------------------------------------------------------------------------
# Module wrapper (weight fusion, torch-view refolds, layout plumbing)
# ----------------------------------------------------------------------------
def ssm2d_forward(x, params, *, tm=512, tl_cap=1024):
    B, H, W, C = x.shape
    L = H * W
    D = C                                   # d_inner
    N = params["A_logs"].shape[1]           # d_state
    R = params["w_dtproj"].shape[1]         # dt_rank

    x = x.astype(jnp.float32)
    w_xproj = params["w_xproj"].astype(jnp.float32)        # (R+2N, C), torch (out,in)
    w_dt = w_xproj[:R].T                                   # (C, R)
    w_b = w_xproj[R:R + N].T                               # (C, N)
    w_c = w_xproj[R + N:].T                                # (C, N)
    w_dtp = params["w_dtproj"].astype(jnp.float32).T       # (R, D)
    b_dtp = params["b_dtproj"].astype(jnp.float32).reshape(1, D)

    # Fuse the tiny dt_rank matmul into the delta projection weight.
    w_delta = w_dt @ w_dtp                                 # (C, D)

    # Kernel 1: bf16 operands (HBM-bound), f32 accumulation and outputs.
    xf = x.reshape(B * L, C)
    delta_f, b_f, c_f = _project(xf.astype(jnp.bfloat16),
                                 w_delta.astype(jnp.bfloat16),
                                 w_b.astype(jnp.bfloat16),
                                 w_c.astype(jnp.bfloat16),
                                 b_dtp, tm=tm)             # (M,D) (M,N) (M,N)

    # torch's .view(B, -1, L) on channels-last tensors is a row-major refold;
    # jnp.reshape (row-major) reproduces it exactly.
    u_cm = x.reshape(B, D, L)
    dl_cm = delta_f.reshape(B, D, L)
    b_cm = b_f.reshape(B, N, L)
    c_cm = c_f.reshape(B, N, L)

    # time-major slabs for the scan kernel
    # TODO(synk): fold this refold + transpose into the scan's index_map
    # (channel-major tiles + one in-kernel transpose) to drop ~4 HBM passes.
    u_t = jnp.transpose(u_cm, (0, 2, 1))                   # (B, L, D)
    dl_t = jnp.transpose(dl_cm, (0, 2, 1))
    b_t = jnp.transpose(b_cm, (0, 2, 1))                   # (B, L, N)
    c_t = jnp.transpose(c_cm, (0, 2, 1))

    # pad channels to a lane-dense multiple of 128 for the scan
    Dp = _round_up(D, 128)
    A_t = jnp.transpose(-jnp.exp(params["A_logs"].astype(jnp.float32)))  # (N, D)
    Ds = params["Ds"].astype(jnp.float32).reshape(1, D)
    if Dp != D:
        pad3 = ((0, 0), (0, 0), (0, Dp - D))
        u_t = jnp.pad(u_t, pad3)
        dl_t = jnp.pad(dl_t, pad3)
        A_t = jnp.pad(A_t, ((0, 0), (0, Dp - D)))
        Ds = jnp.pad(Ds, ((0, 0), (0, Dp - D)))

    y_t = _selective_scan(u_t, dl_t, b_t, c_t, A_t, Ds, tl_cap=tl_cap)  # (B,L,Dp)
    return jnp.transpose(y_t[:, :, :D], (0, 2, 1))         # (B, D, L) f32


# ----------------------------------------------------------------------------
# Pure-JAX reference (same math, no Pallas) for verification
# ----------------------------------------------------------------------------
def ssm2d_reference(x, params):
    B, H, W, C = x.shape
    L = H * W
    N = params["A_logs"].shape[1]
    R = params["w_dtproj"].shape[1]
    x = x.astype(jnp.float32)

    x_dbl = jnp.einsum("bhwc,oc->bhwo", x, params["w_xproj"])
    dts_low = x_dbl[..., :R]
    Bs4 = x_dbl[..., R:R + N]
    Cs4 = x_dbl[..., R + N:]
    dts4 = _softplus(jnp.einsum("bhwr,dr->bhwd", dts_low, params["w_dtproj"])
                     + params["b_dtproj"])

    xs = x.reshape(B, C, L)
    dts = dts4.reshape(B, C, L)
    Bs = Bs4.reshape(B, N, L)
    Cs = Cs4.reshape(B, N, L)
    Ds = params["Ds"]
    As = -jnp.exp(params["A_logs"])          # (C, N)
    delta = _softplus(dts)                   # delta_softplus inside the scan

    def step(h, t):
        dl, ul, bl, cl = t                   # (B,C) (B,C) (B,N) (B,N)
        dA = jnp.exp(dl[..., None] * As[None])
        dBu = (dl * ul)[..., None] * bl[:, None, :]
        h = dA * h + dBu
        y = jnp.sum(h * cl[:, None, :], axis=-1) + Ds[None] * ul
        return h, y

    h0 = jnp.zeros((B, C, N), jnp.float32)
    ts = (jnp.moveaxis(delta, 2, 0), jnp.moveaxis(xs, 2, 0),
          jnp.moveaxis(Bs, 2, 0), jnp.moveaxis(Cs, 2, 0))
    _, ys = lax.scan(step, h0, ts)           # (L, B, C)
    return jnp.transpose(ys, (1, 2, 0))      # (B, C, L)


# ----------------------------------------------------------------------------
# Deterministic parameter init (mirrors SSM2D.__init__ shapes & formulas)
# ----------------------------------------------------------------------------
def init_params(key, d_inner, d_state, dt_rank,
                dt_min=0.001, dt_max=0.1, dt_scale=1.0, dt_init_floor=1e-4):
    k1, k2, k3 = jax.random.split(key, 3)
    bound = 1.0 / math.sqrt(d_inner)
    w_xproj = jax.random.uniform(k1, (dt_rank + 2 * d_state, d_inner),
                                 minval=-bound, maxval=bound, dtype=jnp.float32)
    dt_init_std = dt_rank ** (-0.5) * dt_scale
    w_dtproj = jax.random.uniform(k2, (d_inner, dt_rank),
                                  minval=-dt_init_std, maxval=dt_init_std,
                                  dtype=jnp.float32)
    dt = jnp.exp(jax.random.uniform(k3, (d_inner,), dtype=jnp.float32)
                 * (math.log(dt_max) - math.log(dt_min)) + math.log(dt_min))
    dt = jnp.maximum(dt, dt_init_floor)
    b_dtproj = dt + jnp.log(-jnp.expm1(-dt))
    A_logs = jnp.log(jnp.tile(jnp.arange(1, d_state + 1, dtype=jnp.float32)[None, :],
                              (d_inner, 1)))
    Ds = jnp.ones((d_inner,), jnp.float32)
    return dict(w_xproj=w_xproj, w_dtproj=w_dtproj, b_dtproj=b_dtproj,
                A_logs=A_logs, Ds=Ds)


if __name__ == "__main__":
    B, H, W = 2, 8, 8
    d_inner = 16
    d_state = 8
    dt_rank = 4

    root = jax.random.PRNGKey(0)
    kp, kx = jax.random.split(root)
    params = init_params(kp, d_inner, d_state, dt_rank)
    x = jax.random.normal(kx, (B, H, W, d_inner), dtype=jnp.float32)

    # tl_cap=24 forces multiple L-tiles AND a padded final chunk, exercising
    # both the state carry across the "arbitrary" axis and the L-padding path.
    fwd = jax.jit(partial(ssm2d_forward, tl_cap=24))
    y = jax.block_until_ready(fwd(x, params))

    assert y.shape == (B, d_inner, H * W)
    assert y.dtype == jnp.float32

    y_ref = ssm2d_reference(x, params)
    err = float(jnp.max(jnp.abs(y - y_ref)))
    assert jnp.allclose(y, y_ref, rtol=5e-2, atol=5e-2), "max abs err %g" % err

    print("KERNEL_OK")
</pallas_src>

<mosaic_0001>
module attributes {stable_mosaic.version = 11 : i64} {
  func.func @_proj_kernel(%arg0: i32, %arg1: memref<64x16xbf16, #tpu.memory_space<vmem>>, %arg2: memref<16x16xbf16, #tpu.memory_space<vmem>>, %arg3: memref<16x8xbf16, #tpu.memory_space<vmem>>, %arg4: memref<16x8xbf16, #tpu.memory_space<vmem>>, %arg5: memref<1x16xf32, #tpu.memory_space<vmem>>, %arg6: memref<64x16xf32, #tpu.memory_space<vmem>>, %arg7: memref<64x8xf32, #tpu.memory_space<vmem>>, %arg8: memref<64x8xf32, #tpu.memory_space<vmem>>) attributes {dimension_semantics = [#tpu.dimension_semantics<parallel>], iteration_bounds = array<i64: 2>, scalar_prefetch = 0 : i64, scratch_operands = 0 : i64, tpu.core_type = #tpu.core_type<tc>, window_params = [{transform_indices = @transform_0, window_bounds = array<i64: 64, 16>}, {pipeline_mode = #tpu.pipeline_mode<synchronous>, transform_indices = @transform_1, window_bounds = array<i64: 16, 16>}, {pipeline_mode = #tpu.pipeline_mode<synchronous>, transform_indices = @transform_2, window_bounds = array<i64: 16, 8>}, {pipeline_mode = #tpu.pipeline_mode<synchronous>, transform_indices = @transform_3, window_bounds = array<i64: 16, 8>}, {pipeline_mode = #tpu.pipeline_mode<synchronous>, transform_indices = @transform_4, window_bounds = array<i64: 1, 16>}, {transform_indices = @transform_5, window_bounds = array<i64: 64, 16>}, {transform_indices = @transform_6, window_bounds = array<i64: 64, 8>}, {transform_indices = @transform_7, window_bounds = array<i64: 64, 8>}]} {
    %c0 = arith.constant 0 : index
    %c0_0 = arith.constant 0 : index
    %0 = vector.load %arg1[%c0, %c0_0] : memref<64x16xbf16, #tpu.memory_space<vmem>>, vector<64x16xbf16>
    %c0_1 = arith.constant 0 : index
    %c0_2 = arith.constant 0 : index
    %1 = vector.load %arg2[%c0_1, %c0_2] : memref<16x16xbf16, #tpu.memory_space<vmem>>, vector<16x16xbf16>
    %cst = arith.constant dense<0.000000e+00> : vector<64x16xf32>
    %2 = tpu.matmul %0, %1, %cst {dimension_numbers = #tpu.dot_dimension_numbers<[1], [0], [0], [1], [0, 0, 1, 1], [], []>} : vector<64x16xbf16>, vector<16x16xbf16>, vector<64x16xf32> -> vector<64x16xf32>
    %c0_3 = arith.constant 0 : index
    %c0_4 = arith.constant 0 : index
    %3 = vector.load %arg5[%c0_3, %c0_4] : memref<1x16xf32, #tpu.memory_space<vmem>>, vector<1x16xf32>
    %4 = vector.broadcast %3 : vector<1x16xf32> to vector<64x16xf32>
    %5 = arith.addf %2, %4 : vector<64x16xf32>
    %cst_5 = arith.constant 2.000000e+01 : f32
    %6 = vector.broadcast %cst_5 : f32 to vector<64x16xf32>
    %7 = arith.cmpf ogt, %5, %6 : vector<64x16xf32>
    %cst_6 = arith.constant 2.000000e+01 : f32
    %8 = vector.broadcast %cst_6 : f32 to vector<64x16xf32>
    %9 = arith.minimumf %5, %8 : vector<64x16xf32>
    %10 = math.exp %9 : vector<64x16xf32>
    %11 = math.log1p %10 : vector<64x16xf32>
    %12 = arith.select %7, %5, %11 : vector<64x16xi1>, vector<64x16xf32>
    %cst_7 = arith.constant 2.000000e+01 : f32
    %13 = vector.broadcast %cst_7 : f32 to vector<64x16xf32>
    %14 = arith.cmpf ogt, %12, %13 : vector<64x16xf32>
    %cst_8 = arith.constant 2.000000e+01 : f32
    %15 = vector.broadcast %cst_8 : f32 to vector<64x16xf32>
    %16 = arith.minimumf %12, %15 : vector<64x16xf32>
    %17 = math.exp %16 : vector<64x16xf32>
    %18 = math.log1p %17 : vector<64x16xf32>
    %19 = arith.select %14, %12, %18 : vector<64x16xi1>, vector<64x16xf32>
    %c0_9 = arith.constant 0 : index
    %c0_10 = arith.constant 0 : index
    %20 = vector.load %arg6[%c0_9, %c0_10] : memref<64x16xf32, #tpu.memory_space<vmem>>, vector<64x16xf32>
    tpu.vector_store %arg6[%c0_9, %c0_10], %19 {strides = array<i32>} : memref<64x16xf32, #tpu.memory_space<vmem>>, vector<64x16xf32>,
    %c0_11 = arith.constant 0 : index
    %c0_12 = arith.constant 0 : index
    %21 = vector.load %arg3[%c0_11, %c0_12] : memref<16x8xbf16, #tpu.memory_space<vmem>>, vector<16x8xbf16>
    %cst_13 = arith.constant dense<0.000000e+00> : vector<64x8xf32>
    %22 = tpu.matmul %0, %21, %cst_13 {dimension_numbers = #tpu.dot_dimension_numbers<[1], [0], [0], [1], [0, 0, 1, 1], [], []>} : vector<64x16xbf16>, vector<16x8xbf16>, vector<64x8xf32> -> vector<64x8xf32>
    %c0_14 = arith.constant 0 : index
    %c0_15 = arith.constant 0 : index
    %23 = vector.load %arg7[%c0_14, %c0_15] : memref<64x8xf32, #tpu.memory_space<vmem>>, vector<64x8xf32>
    tpu.vector_store %arg7[%c0_14, %c0_15], %22 {strides = array<i32>} : memref<64x8xf32, #tpu.memory_space<vmem>>, vector<64x8xf32>,
    %c0_16 = arith.constant 0 : index
    %c0_17 = arith.constant 0 : index
    %24 = vector.load %arg4[%c0_16, %c0_17] : memref<16x8xbf16, #tpu.memory_space<vmem>>, vector<16x8xbf16>
    %cst_18 = arith.constant dense<0.000000e+00> : vector<64x8xf32>
    %25 = tpu.matmul %0, %24, %cst_18 {dimension_numbers = #tpu.dot_dimension_numbers<[1], [0], [0], [1], [0, 0, 1, 1], [], []>} : vector<64x16xbf16>, vector<16x8xbf16>, vector<64x8xf32> -> vector<64x8xf32>
    %c0_19 = arith.constant 0 : index
    %c0_20 = arith.constant 0 : index
    %26 = vector.load %arg8[%c0_19, %c0_20] : memref<64x8xf32, #tpu.memory_space<vmem>>, vector<64x8xf32>
    tpu.vector_store %arg8[%c0_19, %c0_20], %25 {strides = array<i32>} : memref<64x8xf32, #tpu.memory_space<vmem>>, vector<64x8xf32>,
    return
  }
  func.func @transform_0(%arg0: i32) -> (i32, i32) {
    %c0_i32 = arith.constant 0 : i32
    %c0_i32_0 = arith.constant 0 : i32
    return %arg0, %c0_i32 : i32, i32
  }
  func.func @transform_1(%arg0: i32) -> (i32, i32) {
    %c0_i32 = arith.constant 0 : i32
    %c0_i32_0 = arith.constant 0 : i32
    %c0_i32_1 = arith.constant 0 : i32
    return %c0_i32, %c0_i32_0 : i32, i32
  }
  func.func @transform_2(%arg0: i32) -> (i32, i32) {
    %c0_i32 = arith.constant 0 : i32
    %c0_i32_0 = arith.constant 0 : i32
    %c0_i32_1 = arith.constant 0 : i32
    return %c0_i32, %c0_i32_0 : i32, i32
  }
  func.func @transform_3(%arg0: i32) -> (i32, i32) {
    %c0_i32 = arith.constant 0 : i32
    %c0_i32_0 = arith.constant 0 : i32
    %c0_i32_1 = arith.constant 0 : i32
    return %c0_i32, %c0_i32_0 : i32, i32
  }
  func.func @transform_4(%arg0: i32) -> (i32, i32) {
    %c0_i32 = arith.constant 0 : i32
    %c0_i32_0 = arith.constant 0 : i32
    %c0_i32_1 = arith.constant 0 : i32
    return %c0_i32, %c0_i32_0 : i32, i32
  }
  func.func @transform_5(%arg0: i32) -> (i32, i32) {
    %c0_i32 = arith.constant 0 : i32
    %c0_i32_0 = arith.constant 0 : i32
    return %arg0, %c0_i32 : i32, i32
  }
  func.func @transform_6(%arg0: i32) -> (i32, i32) {
    %c0_i32 = arith.constant 0 : i32
    %c0_i32_0 = arith.constant 0 : i32
    return %arg0, %c0_i32 : i32, i32
  }
  func.func @transform_7(%arg0: i32) -> (i32, i32) {
    %c0_i32 = arith.constant 0 : i32
    %c0_i32_0 = arith.constant 0 : i32
    return %arg0, %c0_i32 : i32, i32
  }
}

module attributes {stable_mosaic.version = 11 : i64} {
  func.func @_scan_kernel(%arg0: i32, %arg1: i32, %arg2: i32, %arg3: memref<1x24x128xf32, #tpu.memory_space<vmem>>, %arg4: memref<1x24x128xf32, #tpu.memory_space<vmem>>, %arg5: memref<1x24x8xf32, #tpu.memory_space<vmem>>, %arg6: memref<1x24x8xf32, #tpu.memory_space<vmem>>, %arg7: memref<8x128xf32, #tpu.memory_space<vmem>>, %arg8: memref<1x128xf32, #tpu.memory_space<vmem>>, %arg9: memref<1x24x128xf32, #tpu.memory_space<vmem>>, %arg10: memref<8x128xf32, #tpu.memory_space<vmem>>) attributes {dimension_semantics = [#tpu.dimension_semantics<parallel>, #tpu.dimension_semantics<parallel>, #tpu.dimension_semantics<arbitrary>], iteration_bounds = array<i64: 2, 1, 3>, scalar_prefetch = 0 : i64, scratch_operands = 1 : i64, tpu.core_type = #tpu.core_type<tc>, window_params = [{transform_indices = @transform_0, window_bounds = array<i64: 1, 24, 128>}, {transform_indices = @transform_1, window_bounds = array<i64: 1, 24, 128>}, {transform_indices = @transform_2, window_bounds = array<i64: 1, 24, 8>}, {transform_indices = @transform_3, window_bounds = array<i64: 1, 24, 8>}, {transform_indices = @transform_4, window_bounds = array<i64: 8, 128>}, {transform_indices = @transform_5, window_bounds = array<i64: 1, 128>}, {transform_indices = @transform_6, window_bounds = array<i64: 1, 24, 128>}]} {
    %c0_i32 = arith.constant 0 : i32
    %0 = arith.cmpi eq, %arg2, %c0_i32 : i32
    %1 = arith.extui %0 : i1 to i32
    %c0_i32_0 = arith.constant 0 : i32
    %2 = arith.cmpi ne, %1, %c0_i32_0 : i32
    scf.if %2 {
      %cst = arith.constant 0.000000e+00 : f32
      %6 = vector.broadcast %cst : f32 to vector<8x128xf32>
      %c0_6 = arith.constant 0 : index
      %c0_7 = arith.constant 0 : index
      %7 = vector.load %arg10[%c0_6, %c0_7] : memref<8x128xf32, #tpu.memory_space<vmem>>, vector<8x128xf32>
      tpu.vector_store %arg10[%c0_6, %c0_7], %6 {strides = array<i32>} : memref<8x128xf32, #tpu.memory_space<vmem>>, vector<8x128xf32>,
    } else {
    }
    %c0 = arith.constant 0 : index
    %c0_1 = arith.constant 0 : index
    %3 = vector.load %arg7[%c0, %c0_1] : memref<8x128xf32, #tpu.memory_space<vmem>>, vector<8x128xf32>
    %c0_2 = arith.constant 0 : index
    %c0_3 = arith.constant 0 : index
    %4 = vector.load %arg8[%c0_2, %c0_3] : memref<1x128xf32, #tpu.memory_space<vmem>>, vector<1x128xf32>
    %c0_i32_4 = arith.constant 0 : i32
    %c3_i32 = arith.constant 3 : i32
    %5 = arith.addi %c0_i32_4, %c3_i32 : i32
    %c1_i32 = arith.constant 1 : i32
    scf.for %arg11 = %c0_i32_4 to %5 step %c1_i32  : i32 {
      %c8_i32 = arith.constant 8 : i32
      %6 = arith.muli %arg11, %c8_i32 : i32
      %7 = tpu.assume_multiple %6, 8 : i32
      %c0_6 = arith.constant 0 : index
      %8 = arith.index_cast %7 : i32 to index
      %c0_7 = arith.constant 0 : index
      %9 = vector.load %arg4[%c0_6, %8, %c0_7] : memref<1x24x128xf32, #tpu.memory_space<vmem>>, vector<1x8x128xf32>
      %10 = vector.shape_cast %9 : vector<1x8x128xf32> to vector<8x128xf32>
      %c0_8 = arith.constant 0 : index
      %11 = arith.index_cast %7 : i32 to index
      %c0_9 = arith.constant 0 : index
      %12 = vector.load %arg3[%c0_8, %11, %c0_9] : memref<1x24x128xf32, #tpu.memory_space<vmem>>, vector<1x8x128xf32>
      %13 = vector.shape_cast %12 : vector<1x8x128xf32> to vector<8x128xf32>
      %c0_10 = arith.constant 0 : index
      %14 = arith.index_cast %7 : i32 to index
      %c0_11 = arith.constant 0 : index
      %15 = vector.load %arg5[%c0_10, %14, %c0_11] : memref<1x24x8xf32, #tpu.memory_space<vmem>>, vector<1x8x8xf32>
      %16 = vector.shape_cast %15 : vector<1x8x8xf32> to vector<8x8xf32>
      %c0_12 = arith.constant 0 : index
      %17 = arith.index_cast %7 : i32 to index
      %c0_13 = arith.constant 0 : index
      %18 = vector.load %arg6[%c0_12, %17, %c0_13] : memref<1x24x8xf32, #tpu.memory_space<vmem>>, vector<1x8x8xf32>
      %19 = vector.shape_cast %18 : vector<1x8x8xf32> to vector<8x8xf32>
      %20 = arith.mulf %10, %13 : vector<8x128xf32>
      %21 = vector.shape_cast %10 : vector<8x128xf32> to vector<8x1x128xf32>
      %22 = vector.shape_cast %3 : vector<8x128xf32> to vector<1x8x128xf32>
      %23 = vector.broadcast %21 : vector<8x1x128xf32> to vector<8x8x128xf32>
      %24 = vector.broadcast %22 : vector<1x8x128xf32> to vector<8x8x128xf32>
      %25 = arith.mulf %23, %24 : vector<8x8x128xf32>
      %26 = math.exp %25 : vector<8x8x128xf32>
      %27 = vector.shape_cast %16 : vector<8x8xf32> to vector<8x8x1xf32>
      %28 = vector.shape_cast %20 : vector<8x128xf32> to vector<8x1x128xf32>
      %29 = vector.broadcast %27 : vector<8x8x1xf32> to vector<8x8x128xf32>
      %30 = vector.broadcast %28 : vector<8x1x128xf32> to vector<8x8x128xf32>
      %31 = arith.mulf %29, %30 : vector<8x8x128xf32>
      %c0_14 = arith.constant 0 : index
      %c0_15 = arith.constant 0 : index
      %32 = vector.load %arg10[%c0_14, %c0_15] : memref<8x128xf32, #tpu.memory_space<vmem>>, vector<8x128xf32>
      %33 = vector.extract_strided_slice %26 {offsets = [0, 0, 0], sizes = [1, 8, 128], strides = [1, 1, 1]} : vector<8x8x128xf32> to vector<1x8x128xf32>
      %34 = vector.shape_cast %33 : vector<1x8x128xf32> to vector<8x128xf32>
      %35 = arith.mulf %34, %32 : vector<8x128xf32>
      %36 = vector.extract_strided_slice %31 {offsets = [0, 0, 0], sizes = [1, 8, 128], strides = [1, 1, 1]} : vector<8x8x128xf32> to vector<1x8x128xf32>
      %37 = vector.shape_cast %36 : vector<1x8x128xf32> to vector<8x128xf32>
      %38 = arith.addf %35, %37 : vector<8x128xf32>
      %39 = vector.extract_strided_slice %26 {offsets = [1, 0, 0], sizes = [1, 8, 128], strides = [1, 1, 1]} : vector<8x8x128xf32> to vector<1x8x128xf32>
      %40 = vector.shape_cast %39 : vector<1x8x128xf32> to vector<8x128xf32>
      %41 = arith.mulf %40, %38 : vector<8x128xf32>
      %42 = vector.extract_strided_slice %31 {offsets = [1, 0, 0], sizes = [1, 8, 128], strides = [1, 1, 1]} : vector<8x8x128xf32> to vector<1x8x128xf32>
      %43 = vector.shape_cast %42 : vector<1x8x128xf32> to vector<8x128xf32>
      %44 = arith.addf %41, %43 : vector<8x128xf32>
      %45 = vector.extract_strided_slice %26 {offsets = [2, 0, 0], sizes = [1, 8, 128], strides = [1, 1, 1]} : vector<8x8x128xf32> to vector<1x8x128xf32>
      %46 = vector.shape_cast %45 : vector<1x8x128xf32> to vector<8x128xf32>
      %47 = arith.mulf %46, %44 : vector<8x128xf32>
      %48 = vector.extract_strided_slice %31 {offsets = [2, 0, 0], sizes = [1, 8, 128], strides = [1, 1, 1]} : vector<8x8x128xf32> to vector<1x8x128xf32>
      %49 = vector.shape_cast %48 : vector<1x8x128xf32> to vector<8x128xf32>
      %50 = arith.addf %47, %49 : vector<8x128xf32>
      %51 = vector.extract_strided_slice %26 {offsets = [3, 0, 0], sizes = [1, 8, 128], strides = [1, 1, 1]} : vector<8x8x128xf32> to vector<1x8x128xf32>
      %52 = vector.shape_cast %51 : vector<1x8x128xf32> to vector<8x128xf32>
      %53 = arith.mulf %52, %50 : vector<8x128xf32>
      %54 = vector.extract_strided_slice %31 {offsets = [3, 0, 0], sizes = [1, 8, 128], strides = [1, 1, 1]} : vector<8x8x128xf32> to vector<1x8x128xf32>
      %55 = vector.shape_cast %54 : vector<1x8x128xf32> to vector<8x128xf32>
      %56 = arith.addf %53, %55 : vector<8x128xf32>
      %57 = vector.extract_strided_slice %26 {offsets = [4, 0, 0], sizes = [1, 8, 128], strides = [1, 1, 1]} : vector<8x8x128xf32> to vector<1x8x128xf32>
      %58 = vector.shape_cast %57 : vector<1x8x128xf32> to vector<8x128xf32>
      %59 = arith.mulf %58, %56 : vector<8x128xf32>
      %60 = vector.extract_strided_slice %31 {offsets = [4, 0, 0], sizes = [1, 8, 128], strides = [1, 1, 1]} : vector<8x8x128xf32> to vector<1x8x128xf32>
      %61 = vector.shape_cast %60 : vector<1x8x128xf32> to vector<8x128xf32>
      %62 = arith.addf %59, %61 : vector<8x128xf32>
      %63 = vector.extract_strided_slice %26 {offsets = [5, 0, 0], sizes = [1, 8, 128], strides = [1, 1, 1]} : vector<8x8x128xf32> to vector<1x8x128xf32>
      %64 = vector.shape_cast %63 : vector<1x8x128xf32> to vector<8x128xf32>
      %65 = arith.mulf %64, %62 : vector<8x128xf32>
      %66 = vector.extract_strided_slice %31 {offsets = [5, 0, 0], sizes = [1, 8, 128], strides = [1, 1, 1]} : vector<8x8x128xf32> to vector<1x8x128xf32>
      %67 = vector.shape_cast %66 : vector<1x8x128xf32> to vector<8x128xf32>
      %68 = arith.addf %65, %67 : vector<8x128xf32>
      %69 = vector.extract_strided_slice %26 {offsets = [6, 0, 0], sizes = [1, 8, 128], strides = [1, 1, 1]} : vector<8x8x128xf32> to vector<1x8x128xf32>
      %70 = vector.shape_cast %69 : vector<1x8x128xf32> to vector<8x128xf32>
      %71 = arith.mulf %70, %68 : vector<8x128xf32>
      %72 = vector.extract_strided_slice %31 {offsets = [6, 0, 0], sizes = [1, 8, 128], strides = [1, 1, 1]} : vector<8x8x128xf32> to vector<1x8x128xf32>
      %73 = vector.shape_cast %72 : vector<1x8x128xf32> to vector<8x128xf32>
      %74 = arith.addf %71, %73 : vector<8x128xf32>
      %75 = vector.extract_strided_slice %26 {offsets = [7, 0, 0], sizes = [1, 8, 128], strides = [1, 1, 1]} : vector<8x8x128xf32> to vector<1x8x128xf32>
      %76 = vector.shape_cast %75 : vector<1x8x128xf32> to vector<8x128xf32>
      %77 = arith.mulf %76, %74 : vector<8x128xf32>
      %78 = vector.extract_strided_slice %31 {offsets = [7, 0, 0], sizes = [1, 8, 128], strides = [1, 1, 1]} : vector<8x8x128xf32> to vector<1x8x128xf32>
      %79 = vector.shape_cast %78 : vector<1x8x128xf32> to vector<8x128xf32>
      %80 = arith.addf %77, %79 : vector<8x128xf32>
      %c0_16 = arith.constant 0 : index
      %c0_17 = arith.constant 0 : index
      %81 = vector.load %arg10[%c0_16, %c0_17] : memref<8x128xf32, #tpu.memory_space<vmem>>, vector<8x128xf32>
      tpu.vector_store %arg10[%c0_16, %c0_17], %80 {strides = array<i32>} : memref<8x128xf32, #tpu.memory_space<vmem>>, vector<8x128xf32>,
      %82 = vector.shape_cast %38 : vector<8x128xf32> to vector<1x8x128xf32>
      %83 = vector.shape_cast %44 : vector<8x128xf32> to vector<1x8x128xf32>
      %84 = vector.shape_cast %50 : vector<8x128xf32> to vector<1x8x128xf32>
      %85 = vector.shape_cast %56 : vector<8x128xf32> to vector<1x8x128xf32>
      %86 = vector.shape_cast %62 : vector<8x128xf32> to vector<1x8x128xf32>
      %87 = vector.shape_cast %68 : vector<8x128xf32> to vector<1x8x128xf32>
      %88 = vector.shape_cast %74 : vector<8x128xf32> to vector<1x8x128xf32>
      %89 = vector.shape_cast %80 : vector<8x128xf32> to vector<1x8x128xf32>
      %90 = tpu.concatenate %82, %83, %84, %85, %86, %87, %88, %89 in 0 : vector<1x8x128xf32>, vector<1x8x128xf32>, vector<1x8x128xf32>, vector<1x8x128xf32>, vector<1x8x128xf32>, vector<1x8x128xf32>, vector<1x8x128xf32>, vector<1x8x128xf32> -> vector<8x8x128xf32>
      %91 = vector.shape_cast %19 : vector<8x8xf32> to vector<8x8x1xf32>
      %92 = vector.broadcast %91 : vector<8x8x1xf32> to vector<8x8x128xf32>
      %93 = arith.mulf %92, %90 : vector<8x8x128xf32>
      %cst = arith.constant dense<0.000000e+00> : vector<8x128xf32>
      %94 = vector.multi_reduction <add>, %93, %cst [1] : vector<8x8x128xf32> to vector<8x128xf32>
      %95 = vector.broadcast %4 : vector<1x128xf32> to vector<8x128xf32>
      %96 = arith.mulf %95, %13 : vector<8x128xf32>
      %97 = arith.addf %94, %96 : vector<8x128xf32>
      %c0_18 = arith.constant 0 : index
      %98 = arith.index_cast %7 : i32 to index
      %c0_19 = arith.constant 0 : index
      %99 = vector.load %arg9[%c0_18, %98, %c0_19] : memref<1x24x128xf32, #tpu.memory_space<vmem>>, vector<1x8x128xf32>
      %100 = vector.shape_cast %99 : vector<1x8x128xf32> to vector<8x128xf32>
      %101 = vector.shape_cast %97 : vector<8x128xf32> to vector<1x8x128xf32>
      tpu.vector_store %arg9[%c0_18, %98, %c0_19], %101 {strides = array<i32>} : memref<1x24x128xf32, #tpu.memory_space<vmem>>, vector<1x8x128xf32>,
    }
    %c3_i32_5 = arith.constant 3 : i32
    return
  }
  func.func @transform_0(%arg0: i32, %arg1: i32, %arg2: i32) -> (i32, i32, i32) {
    %c0_i32 = arith.constant 0 : i32
    return %arg0, %arg2, %arg1 : i32, i32, i32
  }
  func.func @transform_1(%arg0: i32, %arg1: i32, %arg2: i32) -> (i32, i32, i32) {
    %c0_i32 = arith.constant 0 : i32
    return %arg0, %arg2, %arg1 : i32, i32, i32
  }
  func.func @transform_2(%arg0: i32, %arg1: i32, %arg2: i32) -> (i32, i32, i32) {
    %c0_i32 = arith.constant 0 : i32
    %c0_i32_0 = arith.constant 0 : i32
    return %arg0, %arg2, %c0_i32 : i32, i32, i32
  }
  func.func @transform_3(%arg0: i32, %arg1: i32, %arg2: i32) -> (i32, i32, i32) {
    %c0_i32 = arith.constant 0 : i32
    %c0_i32_0 = arith.constant 0 : i32
    return %arg0, %arg2, %c0_i32 : i32, i32, i32
  }
  func.func @transform_4(%arg0: i32, %arg1: i32, %arg2: i32) -> (i32, i32) {
    %c0_i32 = arith.constant 0 : i32
    %c0_i32_0 = arith.constant 0 : i32
    return %c0_i32, %arg1 : i32, i32
  }
  func.func @transform_5(%arg0: i32, %arg1: i32, %arg2: i32) -> (i32, i32) {
    %c0_i32 = arith.constant 0 : i32
    %c0_i32_0 = arith.constant 0 : i32
    return %c0_i32, %arg1 : i32, i32
  }
  func.func @transform_6(%arg0: i32, %arg1: i32, %arg2: i32) -> (i32, i32, i32) {
    %c0_i32 = arith.constant 0 : i32
    return %arg0, %arg2, %arg1 : i32, i32, i32
  }
}

</mosaic_0001>

<llo_original>
// kernel: ssm2d_forward.2
$region0: #{ssm2d_forward.2}
  #allocation0 [shape = 'u32[]', space=smem, size = 0x4, offset = 0x4, fixed_abs, tag = 'smem constant byte address 0x4 - core index']
  #allocation1 [shape = 'u32[72,128]{1,0:T(1,128)}', space=vmem, size = 0x9000, scoped, tag = 'internal scratch']
  %s0 = inlined_call_operand.vmem [shape: bf16[128,16], index: 0, kind: input, shape index: {}]
  %s1 = inlined_call_operand.vmem [shape: bf16[16,16], index: 1, kind: input, shape index: {}]
  %s2 = inlined_call_operand.vmem [shape: bf16[16,8], index: 2, kind: input, shape index: {}]
  %s3 = inlined_call_operand.vmem [shape: bf16[16,8], index: 3, kind: input, shape index: {}]
  %s4 = inlined_call_operand.vmem [shape: f32[1,16], index: 4, kind: input, shape index: {}]
  %s5 = inlined_call_operand.vmem [shape: f32[128,16], index: 5, kind: output, shape index: {0}]
  %s6 = inlined_call_operand.vmem [shape: f32[128,8], index: 6, kind: output, shape index: {1}]
  %s7 = inlined_call_operand.vmem [shape: f32[128,8], index: 7, kind: output, shape index: {2}]
  %8 = xla_tuple %s5, %s6, %s7
  %s9 = sld [smem:[#allocation0]]
  $region69: #{ssm2d_forward.2} parent=0
    _
  %s11 = ssub.s32 1, %s9
  %s12 = scalar_select 0, %s11, %s9
  loop: start=0, step=1, limit=4
  $region2: #{ssm2d_forward.2} parent=0 // loop_pre_header
    _
  $region3: #{ssm2d_forward.2} parent=0 // loop_header
    %s14 = sphi 0, %s18
    %p15 = scmp.ge.s32.totalorder %s14, 4
    %s24 = sphi 0, %s26
    %s27 = sphi 0, %s24
    %s28 = sphi 0, %s27
    %s44 = sphi 0, %s28
    %s48 = sphi 0, %s48
    %s50 = sphi 0, %s48
    %s51 = sphi 0, %s50
    %s65 = sphi 0, %s51
    %s69 = sphi 0, %s69
    %s71 = sphi 0, %s69
    %s72 = sphi 0, %s71
    %s86 = sphi 0, %s72
    %s90 = sphi 0, %s90
    %s92 = sphi 0, %s90
    %s93 = sphi 0, %s92
    %s107 = sphi 0, %s93
    %s111 = sphi 0, %s111
    %s113 = sphi 0, %s111
    %s114 = sphi 0, %s113
    %s128 = sphi 0, %s114
    %s134 = sphi 0, %s136
    %s137 = sphi 0, %s134
    %s138 = sphi 0, %s137
    %s154 = sphi 0, %s138
    %s160 = sphi 0, %s162
    %s163 = sphi 0, %s160
    %s164 = sphi 0, %s163
    %s180 = sphi 0, %s164
    %s186 = sphi 0, %s188
    %s189 = sphi 0, %s186
    %s190 = sphi 0, %s189
    %s206 = sphi 0, %s190
  $region4: #{ssm2d_forward.2} parent=0 // loop_header_branch
    %17 = sbr.rel (%p15) target = $region8
  $region5: #{ssm2d_forward.2} parent=0 // loop_body
    %s19 = ssub.s32 %s14, 1
    %s20 = ssub.s32 %s14, 2
    %s21 = sadd.s32 %s14, 1
    %s22 = ssub.s32 %s14, %s21
    %p23 = scmp.eq.s32.totalorder %s22, 0
    %s25 = sadd.s32 %s24, 1
    %s26 = scalar_select %p23, %s24, %s25
    %p29 = pneg %p23
    %p30 = scmp.eq.s32.totalorder %s14, 1
    %p31 = por %p29, %p30
    %p32 = scmp.ne.s32.totalorder %s24, %s27
    %p33 = scmp.eq.s32.totalorder %s14, 0
    %p34 = por %p32, %p33
    %p35 = scmp.ne.s32.totalorder %s24, %s27
    %p36 = scmp.eq.s32.totalorder %s19, 1
    %p37 = por %p35, %p36
    %p38 = scmp.ne.s32.totalorder %s27, %s28
    %p39 = scmp.eq.s32.totalorder %s19, 0
    %p40 = por %p38, %p39
    %p41 = scmp.ne.s32.totalorder %s27, %s28
    %p42 = scmp.eq.s32.totalorder %s20, 1
    %p43 = por %p41, %p42
    %p45 = scmp.ne.s32.totalorder %s28, %s44
    %p46 = scmp.eq.s32.totalorder %s20, 0
    %p47 = por %p45, %p46
    %s49 = sadd.s32 %s48, 1
    %p52 = scmp.eq.s32.totalorder %s14, 1
    %p53 = scmp.ne.s32.totalorder %s48, %s50
    %p54 = scmp.eq.s32.totalorder %s14, 0
    %p55 = por %p53, %p54
    %p56 = scmp.ne.s32.totalorder %s48, %s50
    %p57 = scmp.eq.s32.totalorder %s19, 1
    %p58 = por %p56, %p57
    %p59 = scmp.ne.s32.totalorder %s50, %s51
    %p60 = scmp.eq.s32.totalorder %s19, 0
    %p61 = por %p59, %p60
    %p62 = scmp.ne.s32.totalorder %s50, %s51
    %p63 = scmp.eq.s32.totalorder %s20, 1
    %p64 = por %p62, %p63
    %p66 = scmp.ne.s32.totalorder %s51, %s65
    %p67 = scmp.eq.s32.totalorder %s20, 0
    %p68 = por %p66, %p67
    %s70 = sadd.s32 %s69, 1
    %p73 = scmp.eq.s32.totalorder %s14, 1
    %p74 = scmp.ne.s32.totalorder %s69, %s71
    %p75 = scmp.eq.s32.totalorder %s14, 0
    %p76 = por %p74, %p75
    %p77 = scmp.ne.s32.totalorder %s69, %s71
    %p78 = scmp.eq.s32.totalorder %s19, 1
    %p79 = por %p77, %p78
    %p80 = scmp.ne.s32.totalorder %s71, %s72
    %p81 = scmp.eq.s32.totalorder %s19, 0
    %p82 = por %p80, %p81
    %p83 = scmp.ne.s32.totalorder %s71, %s72
    %p84 = scmp.eq.s32.totalorder %s20, 1
    %p85 = por %p83, %p84
    %p87 = scmp.ne.s32.totalorder %s72, %s86
    %p88 = scmp.eq.s32.totalorder %s20, 0
    %p89 = por %p87, %p88
    %s91 = sadd.s32 %s90, 1
    %p94 = scmp.eq.s32.totalorder %s14, 1
    %p95 = scmp.ne.s32.totalorder %s90, %s92
    %p96 = scmp.eq.s32.totalorder %s14, 0
    %p97 = por %p95, %p96
    %p98 = scmp.ne.s32.totalorder %s90, %s92
    %p99 = scmp.eq.s32.totalorder %s19, 1
    %p100 = por %p98, %p99
    %p101 = scmp.ne.s32.totalorder %s92, %s93
    %p102 = scmp.eq.s32.totalorder %s19, 0
    %p103 = por %p101, %p102
    %p104 = scmp.ne.s32.totalorder %s92, %s93
    %p105 = scmp.eq.s32.totalorder %s20, 1
    %p106 = por %p104, %p105
    %p108 = scmp.ne.s32.totalorder %s93, %s107
    %p109 = scmp.eq.s32.totalorder %s20, 0
    %p110 = por %p108, %p109
    %s112 = sadd.s32 %s111, 1
    %p115 = scmp.eq.s32.totalorder %s14, 1
    %p116 = scmp.ne.s32.totalorder %s111, %s113
    %p117 = scmp.eq.s32.totalorder %s14, 0
    %p118 = por %p116, %p117
    %p119 = scmp.ne.s32.totalorder %s111, %s113
    %p120 = scmp.eq.s32.totalorder %s19, 1
    %p121 = por %p119, %p120
    %p122 = scmp.ne.s32.totalorder %s113, %s114
    %p123 = scmp.eq.s32.totalorder %s19, 0
    %p124 = por %p122, %p123
    %p125 = scmp.ne.s32.totalorder %s113, %s114
    %p126 = scmp.eq.s32.totalorder %s20, 1
    %p127 = por %p125, %p126
    %p129 = scmp.ne.s32.totalorder %s114, %s128
    %p130 = scmp.eq.s32.totalorder %s20, 0
    %p131 = por %p129, %p130
    %s132 = ssub.s32 %s14, %s21
    %p133 = scmp.eq.s32.totalorder %s132, 0
    %s135 = sadd.s32 %s134, 1
    %s136 = scalar_select %p133, %s134, %s135
    %p139 = pneg %p133
    %p140 = scmp.eq.s32.totalorder %s14, 1
    %p141 = por %p139, %p140
    %p142 = scmp.ne.s32.totalorder %s134, %s137
    %p143 = scmp.eq.s32.totalorder %s14, 0
    %p144 = por %p142, %p143
    %p145 = scmp.ne.s32.totalorder %s134, %s137
    %p146 = scmp.eq.s32.totalorder %s19, 1
    %p147 = por %p145, %p146
    %p148 = scmp.ne.s32.totalorder %s137, %s138
    %p149 = scmp.eq.s32.totalorder %s19, 0
    %p150 = por %p148, %p149
    %p151 = scmp.ne.s32.totalorder %s137, %s138
    %p152 = scmp.eq.s32.totalorder %s20, 1
    %p153 = por %p151, %p152
    %p155 = scmp.ne.s32.totalorder %s138, %s154
    %p156 = scmp.eq.s32.totalorder %s20, 0
    %p157 = por %p155, %p156
    %s158 = ssub.s32 %s14, %s21
    %p159 = scmp.eq.s32.totalorder %s158, 0
    %s161 = sadd.s32 %s160, 1
    %s162 = scalar_select %p159, %s160, %s161
    %p165 = pneg %p159
    %p166 = scmp.eq.s32.totalorder %s14, 1
    %p167 = por %p165, %p166
    %p168 = scmp.ne.s32.totalorder %s160, %s163
    %p169 = scmp.eq.s32.totalorder %s14, 0
    %p170 = por %p168, %p169
    %p171 = scmp.ne.s32.totalorder %s160, %s163
    %p172 = scmp.eq.s32.totalorder %s19, 1
    %p173 = por %p171, %p172
    %p174 = scmp.ne.s32.totalorder %s163, %s164
    %p175 = scmp.eq.s32.totalorder %s19, 0
    %p176 = por %p174, %p175
    %p177 = scmp.ne.s32.totalorder %s163, %s164
    %p178 = scmp.eq.s32.totalorder %s20, 1
    %p179 = por %p177, %p178
    %p181 = scmp.ne.s32.totalorder %s164, %s180
    %p182 = scmp.eq.s32.totalorder %s20, 0
    %p183 = por %p181, %p182
    %s184 = ssub.s32 %s14, %s21
    %p185 = scmp.eq.s32.totalorder %s184, 0
    %s187 = sadd.s32 %s186, 1
    %s188 = scalar_select %p185, %s186, %s187
    %p191 = pneg %p185
    %p192 = scmp.eq.s32.totalorder %s14, 1
    %p193 = por %p191, %p192
    %p194 = scmp.ne.s32.totalorder %s186, %s189
    %p195 = scmp.eq.s32.totalorder %s14, 0
    %p196 = por %p194, %p195
    %p197 = scmp.ne.s32.totalorder %s186, %s189
    %p198 = scmp.eq.s32.totalorder %s19, 1
    %p199 = por %p197, %p198
    %p200 = scmp.ne.s32.totalorder %s189, %s190
    %p201 = scmp.eq.s32.totalorder %s19, 0
    %p202 = por %p200, %p201
    %p203 = scmp.ne.s32.totalorder %s189, %s190
    %p204 = scmp.eq.s32.totalorder %s20, 1
    %p205 = por %p203, %p204
    %p207 = scmp.ne.s32.totalorder %s190, %s206
    %p208 = scmp.eq.s32.totalorder %s20, 0
    %p209 = por %p207, %p208
    %p210 = scmp.le.s32.totalorder 1, %s14
    %p211 = scmp.lt.s32.totalorder %s14, 3
    %p212 = pnand %p210, %p211
    %p213 = pneg %p212
    // Predicated region
    $region9: #{ssm2d_forward.2} parent=5 // pred_check
      _
    $region10: #{ssm2d_forward.2} parent=5 // pred_check_branch
      %215 = sbr.rel (%p212) target = $region12
    $region11: #{ssm2d_forward.2} parent=5 // pred_region
      %s216 = ssub.s32 %s14, 1
      // Predicated region
      $region13: #{ssm2d_forward.2} parent=11 // pred_check
        %p217 = pneg %p61
      $region14: #{ssm2d_forward.2} parent=11 // pred_check_branch
        %219 = sbr.rel (%p217) target = $region16
      $region15: #{ssm2d_forward.2} parent=11 // pred_region
        _
      $region16: #{ssm2d_forward.2} parent=11 // pred_fallthru
        _
      // Predicated region
      $region17: #{ssm2d_forward.2} parent=11 // pred_check
        %p220 = pneg %p82
      $region18: #{ssm2d_forward.2} parent=11 // pred_check_branch
        %222 = sbr.rel (%p220) target = $region20
      $region19: #{ssm2d_forward.2} parent=11 // pred_region
        _
      $region20: #{ssm2d_forward.2} parent=11 // pred_fallthru
        _
      // Predicated region
      $region21: #{ssm2d_forward.2} parent=11 // pred_check
        %p223 = pneg %p103
      $region22: #{ssm2d_forward.2} parent=11 // pred_check_branch
        %225 = sbr.rel (%p223) target = $region24
      $region23: #{ssm2d_forward.2} parent=11 // pred_region
        _
      $region24: #{ssm2d_forward.2} parent=11 // pred_fallthru
        _
      // Predicated region
      $region25: #{ssm2d_forward.2} parent=11 // pred_check
        %p226 = pneg %p124
      $region26: #{ssm2d_forward.2} parent=11 // pred_check_branch
        %228 = sbr.rel (%p226) target = $region28
      $region27: #{ssm2d_forward.2} parent=11 // pred_region
        _
      $region28: #{ssm2d_forward.2} parent=11 // pred_fallthru
        _
    $region12: #{ssm2d_forward.2} parent=5 // pred_fallthru
      _
    %p229 = scmp.lt.s32.totalorder %s14, 2
    // Predicated region
    $region29: #{ssm2d_forward.2} parent=5 // pred_check
      %p230 = pneg %p229
    $region30: #{ssm2d_forward.2} parent=5 // pred_check_branch
      %232 = sbr.rel (%p230) target = $region32
    $region31: #{ssm2d_forward.2} parent=5 // pred_region
      // Predicated region
      $region33: #{ssm2d_forward.2} parent=31 // pred_check
        %p233 = pneg %p34
      $region34: #{ssm2d_forward.2} parent=31 // pred_check_branch
        %235 = sbr.rel (%p233) target = $region36
      $region35: #{ssm2d_forward.2} parent=31 // pred_region
        %s236 = smul.u32 8, %s14
        %p237 = scmp.lt.s32.totalorder %s236, 15
        %s238 = scalar_select %p237, %s236, 15
        %s239 = smul.addr %s238, 4
        %s240 = scalar_lea.vmem %s0, %s239
        %s241 = smul.u32 8, %s14
      $region36: #{ssm2d_forward.2} parent=31 // pred_fallthru
        _
    $region32: #{ssm2d_forward.2} parent=5 // pred_fallthru
      _
    %p242 = scmp.le.s32.totalorder 1, %s14
    %p243 = scmp.lt.s32.totalorder %s14, 3
    %p244 = pnand %p242, %p243
    %p245 = pneg %p244
    // Predicated region
    $region37: #{ssm2d_forward.2} parent=5 // pred_check
      _
    $region38: #{ssm2d_forward.2} parent=5 // pred_check_branch
      %247 = sbr.rel (%p244) target = $region40
    $region39: #{ssm2d_forward.2} parent=5 // pred_region
      %s248 = ssub.s32 %s14, 1
      %s249 = smul.u32 8, %s19
      %p250 = scmp.lt.s32.totalorder %s249, 15
      %s251 = scalar_select %p250, %s249, 15
      %s252 = smul.addr %s251, 4
      %s253 = scalar_lea.vmem %s0, %s252
      %p254 = pneg %p40
      %p255 = pneg %p37
      %p256 = pneg %p61
      %p257 = pneg %p58
      %p258 = pneg %p82
      %p259 = pneg %p79
      %p260 = pneg %p103
      %p261 = pneg %p100
      %p262 = pneg %p124
      %p263 = pneg %p121
      %p264 = pneg %p150
      %p265 = pneg %p147
      %s266 = smul.u32 8, %s19
      %p267 = scmp.lt.s32.totalorder %s266, 15
      %s268 = scalar_select %p267, %s266, 15
      %s269 = smul.addr %s268, 8
      %s270 = scalar_lea.vmem %s5, %s269
      %p271 = pneg %p176
      %p272 = pneg %p173
      %s273 = smul.u32 8, %s19
      %p274 = scmp.lt.s32.totalorder %s273, 15
      %s275 = scalar_select %p274, %s273, 15
      %s276 = smul.addr %s275, 8
      %s277 = scalar_lea.vmem %s6, %s276
      %p278 = pneg %p202
      %p279 = pneg %p199
      %s280 = smul.u32 8, %s19
      %p281 = scmp.lt.s32.totalorder %s280, 15
      %s282 = scalar_select %p281, %s280, 15
      %s283 = smul.addr %s282, 8
      %s284 = scalar_lea.vmem %s7, %s283
      %s285 = smul.u32 8, %s19
      %p286 = scmp.lt.s32.totalorder %s285, 15
      %s287 = scalar_select %p286, %s285, 15
      %s288 = smul.addr %s287, 4
      %s289 = scalar_lea.vmem %s0, %s288
      %s290 = smul.u32 8, %s19
      %s291 = smul.u32 8, %s19
      %p292 = scmp.lt.s32.totalorder %s291, 15
      %s293 = scalar_select %p292, %s291, 15
      %s294 = smul.addr %s293, 8
      %s295 = scalar_lea.vmem %s5, %s294
      %s296 = smul.u32 8, %s19
      %s297 = smul.u32 8, %s19
      %p298 = scmp.lt.s32.totalorder %s297, 15
      %s299 = scalar_select %p298, %s297, 15
      %s300 = smul.addr %s299, 8
      %s301 = scalar_lea.vmem %s6, %s300
      %s302 = smul.u32 8, %s19
      %s303 = smul.u32 8, %s19
      %p304 = scmp.lt.s32.totalorder %s303, 15
      %s305 = scalar_select %p304, %s303, 15
      %s306 = smul.addr %s305, 8
      %s307 = scalar_lea.vmem %s7, %s306
      %s308 = smul.u32 8, %s19
      %v310 = vld [vmem:[%s289] sm:$0xf]
      %v311 = vld [vmem:[%s289 + $0x4] sm:$0xf]
      %v312 = vld [vmem:[%s289 + $0x8] sm:$0xf]
      %v313 = vld [vmem:[%s289 + $0xc] sm:$0xf]
      %v314 = vld [vmem:[%s289 + $0x10] sm:$0xf]
      %v315 = vld [vmem:[%s289 + $0x14] sm:$0xf]
      %v316 = vld [vmem:[%s289 + $0x18] sm:$0xf]
      %v317 = vld [vmem:[%s289 + $0x1c] sm:$0xf]
      %v318 = vld [vmem:[%s1] sm:$0xf]
      %v319 = vld [vmem:[%s1 + $0x4] sm:$0xf]
      %v320 = vld [vmem:[%s4] sm:$0x1]
      %v322 = vperm.slane %v320, 0
      %v332 = vunpack.c.l.b16 %v310
      %v333 = vunpack.c.l.b16 %v311
      %v334 = vunpack.c.l.b16 %v312
      %v335 = vunpack.c.l.b16 %v313
      %v336 = vunpack.c.l.b16 %v314
      %v337 = vunpack.c.l.b16 %v315
      %v338 = vunpack.c.l.b16 %v316
      %v339 = vunpack.c.l.b16 %v317
      %v340 = vpack.c.b16 %v333, %v332
      %v341 = vpack.c.b16 %v335, %v334
      %v342 = vpack.c.b16 %v337, %v336
      %v343 = vpack.c.b16 %v339, %v338
      %v346 = vunpack.c.l.b16 %v318
      %v347 = vunpack.c.l.b16 %v319
      %v348 = vpack.c.b16 %v347, %v346
      %vm350 = vcmask 130048
      %v352 = vsel %vm350, %v340, 0
      %v355 = vsel %vm350, %v341, 0
      %v358 = vsel %vm350, %v342, 0
      %v361 = vsel %vm350, %v343, 0
      %363 = vmatpush.bf16.msra.mxu0 0
      %364 = vmatpush.bf16.msra.mxu0 0
      %365 = vmatpush.bf16.msra.mxu0 0
      %366 = vmatpush.bf16.msra.mxu0 0
      %367 = vmatpush.bf16.msra.mxu0 0
      %368 = vmatpush.bf16.msra.mxu0 0
      %369 = vmatpush.bf16.msra.mxu0 0
      %370 = vmatpush.bf16.msra.mxu0 %v348
      %371 = vmatmul.bf16.gmra.mxu0 %v352
      %v372 = vpop.f32.mrf.mxu0
      %v373 = vadd.f32 %v322, %v372
      %v374 = vpop.f32.mrf.mxu0
      %v375 = vadd.f32 %v322, %v374
      %376 = vmatmul.bf16.gmra.mxu0 %v355
      %v377 = vpop.f32.mrf.mxu0
      %v378 = vadd.f32 %v322, %v377
      %v379 = vpop.f32.mrf.mxu0
      %v380 = vadd.f32 %v322, %v379
      %381 = vmatmul.bf16.gmra.mxu0 %v358
      %v382 = vpop.f32.mrf.mxu0
      %v383 = vadd.f32 %v322, %v382
      %v384 = vpop.f32.mrf.mxu0
      %v385 = vadd.f32 %v322, %v384
      %386 = vmatmul.bf16.gmra.mxu0 %v361
      %v387 = vpop.f32.mrf.mxu0
      %v388 = vadd.f32 %v322, %v387
      %v389 = vpop.f32.mrf.mxu0
      %v390 = vadd.f32 %v322, %v389
      %391 = vdwg.mxu0
      %vm392 = vcmp.gt.f32.partialorder %v373, 20.0
      %vm393 = vcmp.gt.f32.partialorder %v375, 20.0
      %vm394 = vcmp.gt.f32.partialorder %v378, 20.0
      %vm395 = vcmp.gt.f32.partialorder %v380, 20.0
      %vm396 = vcmp.gt.f32.partialorder %v383, 20.0
      %vm397 = vcmp.gt.f32.partialorder %v385, 20.0
      %vm398 = vcmp.gt.f32.partialorder %v388, 20.0
      %vm399 = vcmp.gt.f32.partialorder %v390, 20.0
      %v400 = vmin.f32 %v373, 20.0
      %v401 = vmin.f32 %v375, 20.0
      %v402 = vmin.f32 %v378, 20.0
      %v403 = vmin.f32 %v380, 20.0
      %v404 = vmin.f32 %v383, 20.0
      %v405 = vmin.f32 %v385, 20.0
      %v406 = vmin.f32 %v388, 20.0
      %v407 = vmin.f32 %v390, 20.0
      %v408 = vmul.f32 %v400, 1.442695
      %v409 = vpow.pop %v408
      %v410 = vmul.f32 %v401, 1.442695
      %v411 = vpow.pop %v410
      %v412 = vmul.f32 %v402, 1.442695
      %v413 = vpow.pop %v412
      %v414 = vmul.f32 %v403, 1.442695
      %v415 = vpow.pop %v414
      %v416 = vmul.f32 %v404, 1.442695
      %v417 = vpow.pop %v416
      %v418 = vmul.f32 %v405, 1.442695
      %v419 = vpow.pop %v418
      %v420 = vmul.f32 %v406, 1.442695
      %v421 = vpow.pop %v420
      %v422 = vmul.f32 %v407, 1.442695
      %v423 = vpow.pop %v422
      %v424 = vadd.f32 %v409, 1.0
      %v425 = vlog2.pop %v424
      %v426 = vmul.f32 %v425, 0.6931472
      %v427 = vmul.f32 -0.5, %v409
      %v428 = vadd.f32 %v427, 1.0
      %v429 = vmul.f32 %v428, %v409
      %v430 = vand.u32 2147483647, %v409
      %vm431 = vcmp.lt.f32.partialorder %v430, 0.0004427343
      %v432 = vsel %vm431, %v429, %v426
      %v433 = vadd.f32 %v411, 1.0
      %v434 = vlog2.pop %v433
      %v435 = vmul.f32 %v434, 0.6931472
      %v436 = vmul.f32 -0.5, %v411
      %v437 = vadd.f32 %v436, 1.0
      %v438 = vmul.f32 %v437, %v411
      %v439 = vand.u32 2147483647, %v411
      %vm440 = vcmp.lt.f32.partialorder %v439, 0.0004427343
      %v441 = vsel %vm440, %v438, %v435
      %v442 = vadd.f32 %v413, 1.0
      %v443 = vlog2.pop %v442
      %v444 = vmul.f32 %v443, 0.6931472
      %v445 = vmul.f32 -0.5, %v413
      %v446 = vadd.f32 %v445, 1.0
      %v447 = vmul.f32 %v446, %v413
      %v448 = vand.u32 2147483647, %v413
      %vm449 = vcmp.lt.f32.partialorder %v448, 0.0004427343
      %v450 = vsel %vm449, %v447, %v444
      %v451 = vadd.f32 %v415, 1.0
      %v452 = vlog2.pop %v451
      %v453 = vmul.f32 %v452, 0.6931472
      %v454 = vmul.f32 -0.5, %v415
      %v455 = vadd.f32 %v454, 1.0
      %v456 = vmul.f32 %v455, %v415
      %v457 = vand.u32 2147483647, %v415
      %vm458 = vcmp.lt.f32.partialorder %v457, 0.0004427343
      %v459 = vsel %vm458, %v456, %v453
      %v460 = vadd.f32 %v417, 1.0
      %v461 = vlog2.pop %v460
      %v462 = vmul.f32 %v461, 0.6931472
      %v463 = vmul.f32 -0.5, %v417
      %v464 = vadd.f32 %v463, 1.0
      %v465 = vmul.f32 %v464, %v417
      %v466 = vand.u32 2147483647, %v417
      %vm467 = vcmp.lt.f32.partialorder %v466, 0.0004427343
      %v468 = vsel %vm467, %v465, %v462
      %v469 = vadd.f32 %v419, 1.0
      %v470 = vlog2.pop %v469
      %v471 = vmul.f32 %v470, 0.6931472
      %v472 = vmul.f32 -0.5, %v419
      %v473 = vadd.f32 %v472, 1.0
      %v474 = vmul.f32 %v473, %v419
      %v475 = vand.u32 2147483647, %v419
      %vm476 = vcmp.lt.f32.partialorder %v475, 0.0004427343
      %v477 = vsel %vm476, %v474, %v471
      %v478 = vadd.f32 %v421, 1.0
      %v479 = vlog2.pop %v478
      %v480 = vmul.f32 %v479, 0.6931472
      %v481 = vmul.f32 -0.5, %v421
      %v482 = vadd.f32 %v481, 1.0
      %v483 = vmul.f32 %v482, %v421
      %v484 = vand.u32 2147483647, %v421
      %vm485 = vcmp.lt.f32.partialorder %v484, 0.0004427343
      %v486 = vsel %vm485, %v483, %v480
      %v487 = vadd.f32 %v423, 1.0
      %v488 = vlog2.pop %v487
      %v489 = vmul.f32 %v488, 0.6931472
      %v490 = vmul.f32 -0.5, %v423
      %v491 = vadd.f32 %v490, 1.0
      %v492 = vmul.f32 %v491, %v423
      %v493 = vand.u32 2147483647, %v423
      %vm494 = vcmp.lt.f32.partialorder %v493, 0.0004427343
      %v495 = vsel %vm494, %v492, %v489
      %v496 = vsel %vm392, %v373, %v432
      %v497 = vsel %vm393, %v375, %v441
      %v498 = vsel %vm394, %v378, %v450
      %v499 = vsel %vm395, %v380, %v459
      %v500 = vsel %vm396, %v383, %v468
      %v501 = vsel %vm397, %v385, %v477
      %v502 = vsel %vm398, %v388, %v486
      %v503 = vsel %vm399, %v390, %v495
      %vm504 = vcmp.gt.f32.partialorder %v496, 20.0
      %vm505 = vcmp.gt.f32.partialorder %v497, 20.0
      %vm506 = vcmp.gt.f32.partialorder %v498, 20.0
      %vm507 = vcmp.gt.f32.partialorder %v499, 20.0
      %vm508 = vcmp.gt.f32.partialorder %v500, 20.0
      %vm509 = vcmp.gt.f32.partialorder %v501, 20.0
      %vm510 = vcmp.gt.f32.partialorder %v502, 20.0
      %vm511 = vcmp.gt.f32.partialorder %v503, 20.0
      %v512 = vmin.f32 %v496, 20.0
      %v513 = vmin.f32 %v497, 20.0
      %v514 = vmin.f32 %v498, 20.0
      %v515 = vmin.f32 %v499, 20.0
      %v516 = vmin.f32 %v500, 20.0
      %v517 = vmin.f32 %v501, 20.0
      %v518 = vmin.f32 %v502, 20.0
      %v519 = vmin.f32 %v503, 20.0
      %v520 = vmul.f32 %v512, 1.442695
      %v521 = vpow.pop %v520
      %v522 = vmul.f32 %v513, 1.442695
      %v523 = vpow.pop %v522
      %v524 = vmul.f32 %v514, 1.442695
      %v525 = vpow.pop %v524
      %v526 = vmul.f32 %v515, 1.442695
      %v527 = vpow.pop %v526
      %v528 = vmul.f32 %v516, 1.442695
      %v529 = vpow.pop %v528
      %v530 = vmul.f32 %v517, 1.442695
      %v531 = vpow.pop %v530
      %v532 = vmul.f32 %v518, 1.442695
      %v533 = vpow.pop %v532
      %v534 = vmul.f32 %v519, 1.442695
      %v535 = vpow.pop %v534
      %v536 = vadd.f32 %v521, 1.0
      %v537 = vlog2.pop %v536
      %v538 = vmul.f32 %v537, 0.6931472
      %v539 = vmul.f32 -0.5, %v521
      %v540 = vadd.f32 %v539, 1.0
      %v541 = vmul.f32 %v540, %v521
      %v542 = vand.u32 2147483647, %v521
      %vm543 = vcmp.lt.f32.partialorder %v542, 0.0004427343
      %v544 = vsel %vm543, %v541, %v538
      %v545 = vadd.f32 %v523, 1.0
      %v546 = vlog2.pop %v545
      %v547 = vmul.f32 %v546, 0.6931472
      %v548 = vmul.f32 -0.5, %v523
      %v549 = vadd.f32 %v548, 1.0
      %v550 = vmul.f32 %v549, %v523
      %v551 = vand.u32 2147483647, %v523
      %vm552 = vcmp.lt.f32.partialorder %v551, 0.0004427343
      %v553 = vsel %vm552, %v550, %v547
      %v554 = vadd.f32 %v525, 1.0
      %v555 = vlog2.pop %v554
      %v556 = vmul.f32 %v555, 0.6931472
      %v557 = vmul.f32 -0.5, %v525
      %v558 = vadd.f32 %v557, 1.0
      %v559 = vmul.f32 %v558, %v525
      %v560 = vand.u32 2147483647, %v525
      %vm561 = vcmp.lt.f32.partialorder %v560, 0.0004427343
      %v562 = vsel %vm561, %v559, %v556
      %v563 = vadd.f32 %v527, 1.0
      %v564 = vlog2.pop %v563
      %v565 = vmul.f32 %v564, 0.6931472
      %v566 = vmul.f32 -0.5, %v527
      %v567 = vadd.f32 %v566, 1.0
      %v568 = vmul.f32 %v567, %v527
      %v569 = vand.u32 2147483647, %v527
      %vm570 = vcmp.lt.f32.partialorder %v569, 0.0004427343
      %v571 = vsel %vm570, %v568, %v565
      %v572 = vadd.f32 %v529, 1.0
      %v573 = vlog2.pop %v572
      %v574 = vmul.f32 %v573, 0.6931472
      %v575 = vmul.f32 -0.5, %v529
      %v576 = vadd.f32 %v575, 1.0
      %v577 = vmul.f32 %v576, %v529
      %v578 = vand.u32 2147483647, %v529
      %vm579 = vcmp.lt.f32.partialorder %v578, 0.0004427343
      %v580 = vsel %vm579, %v577, %v574
      %v581 = vadd.f32 %v531, 1.0
      %v582 = vlog2.pop %v581
      %v583 = vmul.f32 %v582, 0.6931472
      %v584 = vmul.f32 -0.5, %v531
      %v585 = vadd.f32 %v584, 1.0
      %v586 = vmul.f32 %v585, %v531
      %v587 = vand.u32 2147483647, %v531
      %vm588 = vcmp.lt.f32.partialorder %v587, 0.0004427343
      %v589 = vsel %vm588, %v586, %v583
      %v590 = vadd.f32 %v533, 1.0
      %v591 = vlog2.pop %v590
      %v592 = vmul.f32 %v591, 0.6931472
      %v593 = vmul.f32 -0.5, %v533
      %v594 = vadd.f32 %v593, 1.0
      %v595 = vmul.f32 %v594, %v533
      %v596 = vand.u32 2147483647, %v533
      %vm597 = vcmp.lt.f32.partialorder %v596, 0.0004427343
      %v598 = vsel %vm597, %v595, %v592
      %v599 = vadd.f32 %v535, 1.0
      %v600 = vlog2.pop %v599
      %v601 = vmul.f32 %v600, 0.6931472
      %v602 = vmul.f32 -0.5, %v535
      %v603 = vadd.f32 %v602, 1.0
      %v604 = vmul.f32 %v603, %v535
      %v605 = vand.u32 2147483647, %v535
      %vm606 = vcmp.lt.f32.partialorder %v605, 0.0004427343
      %v607 = vsel %vm606, %v604, %v601
      %v608 = vsel %vm504, %v496, %v544
      %v609 = vsel %vm505, %v497, %v553
      %v610 = vsel %vm506, %v498, %v562
      %v611 = vsel %vm507, %v499, %v571
      %v612 = vsel %vm508, %v500, %v580
      %v613 = vsel %vm509, %v501, %v589
      %v614 = vsel %vm510, %v502, %v598
      %v615 = vsel %vm511, %v503, %v607
      %616 = vst.msk [vmem:[%s295] sm:$0xff] %vm350, %v608
      %617 = vst.msk [vmem:[%s295 + $0x8] sm:$0xff] %vm350, %v609
      %618 = vst.msk [vmem:[%s295 + $0x10] sm:$0xff] %vm350, %v610
      %619 = vst.msk [vmem:[%s295 + $0x18] sm:$0xff] %vm350, %v611
      %620 = vst.msk [vmem:[%s295 + $0x20] sm:$0xff] %vm350, %v612
      %621 = vst.msk [vmem:[%s295 + $0x28] sm:$0xff] %vm350, %v613
      %622 = vst.msk [vmem:[%s295 + $0x30] sm:$0xff] %vm350, %v614
      %623 = vst.msk [vmem:[%s295 + $0x38] sm:$0xff] %vm350, %v615
      %v624 = vld [vmem:[%s2] sm:$0xf]
      %v625 = vld [vmem:[%s2 + $0x4] sm:$0xf]
      %v628 = vunpack.c.l.b16 %v624
      %v629 = vunpack.c.l.b16 %v625
      %v630 = vpack.c.b16 %v629, %v628
      %632 = vmatpush.bf16.msra.mxu0 0
      %633 = vmatpush.bf16.msra.mxu0 0
      %634 = vmatpush.bf16.msra.mxu0 0
      %635 = vmatpush.bf16.msra.mxu0 0
      %636 = vmatpush.bf16.msra.mxu0 0
      %637 = vmatpush.bf16.msra.mxu0 0
      %638 = vmatpush.bf16.msra.mxu0 0
      %639 = vmatpush.bf16.msra.mxu0 %v630
      %640 = vmatmul.bf16.gmra.mxu0 %v352
      %v641 = vpop.f32.mrf.mxu0
      %v642 = vadd.f32 0.0, %v641
      %v643 = vpop.f32.mrf.mxu0
      %v644 = vadd.f32 0.0, %v643
      %645 = vmatmul.bf16.gmra.mxu0 %v355
      %v646 = vpop.f32.mrf.mxu0
      %v647 = vadd.f32 0.0, %v646
      %v648 = vpop.f32.mrf.mxu0
      %v649 = vadd.f32 0.0, %v648
      %650 = vmatmul.bf16.gmra.mxu0 %v358
      %v651 = vpop.f32.mrf.mxu0
      %v652 = vadd.f32 0.0, %v651
      %v653 = vpop.f32.mrf.mxu0
      %v654 = vadd.f32 0.0, %v653
      %655 = vmatmul.bf16.gmra.mxu0 %v361
      %v656 = vpop.f32.mrf.mxu0
      %v657 = vadd.f32 0.0, %v656
      %v658 = vpop.f32.mrf.mxu0
      %v659 = vadd.f32 0.0, %v658
      %660 = vdwg.mxu0
      %vm661 = vcmask 64512
      %662 = vst.msk [vmem:[%s301] sm:$0xff] %vm661, %v642
      %663 = vst.msk [vmem:[%s301 + $0x8] sm:$0xff] %vm661, %v644
      %664 = vst.msk [vmem:[%s301 + $0x10] sm:$0xff] %vm661, %v647
      %665 = vst.msk [vmem:[%s301 + $0x18] sm:$0xff] %vm661, %v649
      %666 = vst.msk [vmem:[%s301 + $0x20] sm:$0xff] %vm661, %v652
      %667 = vst.msk [vmem:[%s301 + $0x28] sm:$0xff] %vm661, %v654
      %668 = vst.msk [vmem:[%s301 + $0x30] sm:$0xff] %vm661, %v657
      %669 = vst.msk [vmem:[%s301 + $0x38] sm:$0xff] %vm661, %v659
      %v670 = vld [vmem:[%s3] sm:$0xf]
      %v671 = vld [vmem:[%s3 + $0x4] sm:$0xf]
      %v674 = vunpack.c.l.b16 %v670
      %v675 = vunpack.c.l.b16 %v671
      %v676 = vpack.c.b16 %v675, %v674
      %678 = vmatpush.bf16.msra.mxu0 0
      %679 = vmatpush.bf16.msra.mxu0 0
      %680 = vmatpush.bf16.msra.mxu0 0
      %681 = vmatpush.bf16.msra.mxu0 0
      %682 = vmatpush.bf16.msra.mxu0 0
      %683 = vmatpush.bf16.msra.mxu0 0
      %684 = vmatpush.bf16.msra.mxu0 0
      %685 = vmatpush.bf16.msra.mxu0 %v676
      %686 = vmatmul.bf16.gmra.mxu0 %v352
      %v687 = vpop.f32.mrf.mxu0
      %v688 = vadd.f32 0.0, %v687
      %v689 = vpop.f32.mrf.mxu0
      %v690 = vadd.f32 0.0, %v689
      %691 = vmatmul.bf16.gmra.mxu0 %v355
      %v692 = vpop.f32.mrf.mxu0
      %v693 = vadd.f32 0.0, %v692
      %v694 = vpop.f32.mrf.mxu0
      %v695 = vadd.f32 0.0, %v694
      %696 = vmatmul.bf16.gmra.mxu0 %v358
      %v697 = vpop.f32.mrf.mxu0
      %v698 = vadd.f32 0.0, %v697
      %v699 = vpop.f32.mrf.mxu0
      %v700 = vadd.f32 0.0, %v699
      %701 = vmatmul.bf16.gmra.mxu0 %v361
      %v702 = vpop.f32.mrf.mxu0
      %v703 = vadd.f32 0.0, %v702
      %v704 = vpop.f32.mrf.mxu0
      %v705 = vadd.f32 0.0, %v704
      %706 = vdwg.mxu0
      %707 = vst.msk [vmem:[%s307] sm:$0xff] %vm661, %v688
      %708 = vst.msk [vmem:[%s307 + $0x8] sm:$0xff] %vm661, %v690
      %709 = vst.msk [vmem:[%s307 + $0x10] sm:$0xff] %vm661, %v693
      %710 = vst.msk [vmem:[%s307 + $0x18] sm:$0xff] %vm661, %v695
      %711 = vst.msk [vmem:[%s307 + $0x20] sm:$0xff] %vm661, %v698
      %712 = vst.msk [vmem:[%s307 + $0x28] sm:$0xff] %vm661, %v700
      %713 = vst.msk [vmem:[%s307 + $0x30] sm:$0xff] %vm661, %v703
      %714 = vst.msk [vmem:[%s307 + $0x38] sm:$0xff] %vm661, %v705
      %s715 = smul.u32 8, %s19
      %p716 = scmp.lt.s32.totalorder %s715, 15
      %s717 = scalar_select %p716, %s715, 15
      %s718 = smul.addr %s717, 8
      %s719 = scalar_lea.vmem %s5, %s718
      %s720 = smul.u32 8, %s19
      %p721 = scmp.lt.s32.totalorder %s720, 15
      %s722 = scalar_select %p721, %s720, 15
      %s723 = smul.addr %s722, 8
      %s724 = scalar_lea.vmem %s6, %s723
      %s725 = smul.u32 8, %s19
      %p726 = scmp.lt.s32.totalorder %s725, 15
      %s727 = scalar_select %p726, %s725, 15
      %s728 = smul.addr %s727, 8
      %s729 = scalar_lea.vmem %s7, %s728
      // Predicated region
      $region41: #{ssm2d_forward.2} parent=39 // pred_check
        %p730 = pneg %p147
      $region42: #{ssm2d_forward.2} parent=39 // pred_check_branch
        %732 = sbr.rel (%p730) target = $region44
      $region43: #{ssm2d_forward.2} parent=39 // pred_region
        %s733 = smul.u32 8, %s19
      $region44: #{ssm2d_forward.2} parent=39 // pred_fallthru
        _
      // Predicated region
      $region45: #{ssm2d_forward.2} parent=39 // pred_check
        %p734 = pneg %p173
      $region46: #{ssm2d_forward.2} parent=39 // pred_check_branch
        %736 = sbr.rel (%p734) target = $region48
      $region47: #{ssm2d_forward.2} parent=39 // pred_region
        %s737 = smul.u32 8, %s19
      $region48: #{ssm2d_forward.2} parent=39 // pred_fallthru
        _
      // Predicated region
      $region49: #{ssm2d_forward.2} parent=39 // pred_check
        %p738 = pneg %p199
      $region50: #{ssm2d_forward.2} parent=39 // pred_check_branch
        %740 = sbr.rel (%p738) target = $region52
      $region51: #{ssm2d_forward.2} parent=39 // pred_region
        %s741 = smul.u32 8, %s19
      $region52: #{ssm2d_forward.2} parent=39 // pred_fallthru
        _
    $region40: #{ssm2d_forward.2} parent=5 // pred_fallthru
      _
    %p742 = scmp.le.s32.totalorder 2, %s14
    // Predicated region
    $region53: #{ssm2d_forward.2} parent=5 // pred_check
      %p743 = pneg %p742
    $region54: #{ssm2d_forward.2} parent=5 // pred_check_branch
      %745 = sbr.rel (%p743) target = $region56
    $region55: #{ssm2d_forward.2} parent=5 // pred_region
      %s746 = ssub.s32 %s14, 2
      // Predicated region
      $region57: #{ssm2d_forward.2} parent=55 // pred_check
        %p747 = pneg %p153
      $region58: #{ssm2d_forward.2} parent=55 // pred_check_branch
        %749 = sbr.rel (%p747) target = $region60
      $region59: #{ssm2d_forward.2} parent=55 // pred_region
        %s750 = smul.u32 8, %s20
        %p751 = scmp.lt.s32.totalorder %s750, 15
        %s752 = scalar_select %p751, %s750, 15
        %s753 = smul.addr %s752, 8
        %s754 = scalar_lea.vmem %s5, %s753
      $region60: #{ssm2d_forward.2} parent=55 // pred_fallthru
        _
      // Predicated region
      $region61: #{ssm2d_forward.2} parent=55 // pred_check
        %p755 = pneg %p179
      $region62: #{ssm2d_forward.2} parent=55 // pred_check_branch
        %757 = sbr.rel (%p755) target = $region64
      $region63: #{ssm2d_forward.2} parent=55 // pred_region
        %s758 = smul.u32 8, %s20
        %p759 = scmp.lt.s32.totalorder %s758, 15
        %s760 = scalar_select %p759, %s758, 15
        %s761 = smul.addr %s760, 8
        %s762 = scalar_lea.vmem %s6, %s761
      $region64: #{ssm2d_forward.2} parent=55 // pred_fallthru
        _
      // Predicated region
      $region65: #{ssm2d_forward.2} parent=55 // pred_check
        %p763 = pneg %p205
      $region66: #{ssm2d_forward.2} parent=55 // pred_check_branch
        %765 = sbr.rel (%p763) target = $region68
      $region67: #{ssm2d_forward.2} parent=55 // pred_region
        %s766 = smul.u32 8, %s20
        %p767 = scmp.lt.s32.totalorder %s766, 15
        %s768 = scalar_select %p767, %s766, 15
        %s769 = smul.addr %s768, 8
        %s770 = scalar_lea.vmem %s7, %s769
      $region68: #{ssm2d_forward.2} parent=55 // pred_fallthru
        _
    $region56: #{ssm2d_forward.2} parent=5 // pred_fallthru
      _
  $region6: #{ssm2d_forward.2} parent=0 // loop_footer
    %s18 = sadd.s32 1, %s14
  $region7: #{ssm2d_forward.2} parent=0 // loop_footer_branch
    %13 = sbr.rel target = $region3
  $region8: #{ssm2d_forward.2} parent=0 // loop_exit
    _

// kernel: ssm2d_forward.3
$region0: #{ssm2d_forward.3}
  #allocation0 [shape = 'u32[]', space=smem, size = 0x4, offset = 0x4, fixed_abs, tag = 'smem constant byte address 0x4 - core index']
  #allocation1 [shape = 'u32[72,128]{1,0:T(1,128)}', space=vmem, size = 0x9000, scoped, tag = 'internal scratch']
  #allocation2 [shape = 'f32[8,128]{1,0:T(8,128)}', space=vmem, size = 0x1000, scoped, tag = 'scratch operand']
  %s0 = inlined_call_operand.vmem [shape: f32[2,72,128], index: 0, kind: input, shape index: {}]
  %s1 = inlined_call_operand.vmem [shape: f32[2,72,128], index: 1, kind: input, shape index: {}]
  %s2 = inlined_call_operand.vmem [shape: f32[2,72,8], index: 2, kind: input, shape index: {}]
  %s3 = inlined_call_operand.vmem [shape: f32[2,72,8], index: 3, kind: input, shape index: {}]
  %s4 = inlined_call_operand.vmem [shape: f32[8,128], index: 4, kind: input, shape index: {}]
  %s5 = inlined_call_operand.vmem [shape: f32[1,128], index: 5, kind: input, shape index: {}]
  %s6 = inlined_call_operand.vmem [shape: f32[2,72,128], index: 6, kind: output, shape index: {}]
  %s7 = sld [smem:[#allocation0]]
  $region68: #{ssm2d_forward.3} parent=0
    _
  %s9 = ssub.s32 1, %s7
  %s10 = scalar_select 0, %s9, %s7
  loop: start=0, step=1, limit=8
  $region2: #{ssm2d_forward.3} parent=0 // loop_pre_header
    _
  $region3: #{ssm2d_forward.3} parent=0 // loop_header
    %s12 = sphi 0, %s16
    %p13 = scmp.ge.s32.totalorder %s12, 8
    %s19 = sphi 0, %s38
    %s20 = sphi 0, %s34
    %s21 = sphi 0, %s30
    %s22 = sphi 0, %s19
    %s23 = sphi 0, %s20
    %s24 = sphi 0, %s21
    %s25 = sphi 0, %s22
    %s26 = sphi 0, %s23
    %s27 = sphi 0, %s24
    %s45 = sphi 0, %s47
    %s48 = sphi 0, %s45
    %s49 = sphi 0, %s48
    %s65 = sphi 0, %s49
    %s75 = sphi 0, %s77
    %s78 = sphi 0, %s75
    %s79 = sphi 0, %s78
    %s95 = sphi 0, %s79
    %s103 = sphi 0, %s105
    %s106 = sphi 0, %s103
    %s107 = sphi 0, %s106
    %s123 = sphi 0, %s107
    %s131 = sphi 0, %s133
    %s134 = sphi 0, %s131
    %s135 = sphi 0, %s134
    %s151 = sphi 0, %s135
    %s157 = sphi 0, %s159
    %s160 = sphi 0, %s157
    %s161 = sphi 0, %s160
    %s177 = sphi 0, %s161
    %s183 = sphi 0, %s185
    %s186 = sphi 0, %s183
    %s187 = sphi 0, %s186
    %s203 = sphi 0, %s187
    %s213 = sphi 0, %s215
    %s216 = sphi 0, %s213
    %s217 = sphi 0, %s216
    %s233 = sphi 0, %s217
  $region4: #{ssm2d_forward.3} parent=0 // loop_header_branch
    %15 = sbr.rel (%p13) target = $region8
  $region5: #{ssm2d_forward.3} parent=0 // loop_body
    %s17 = ssub.s32 %s12, 1
    %s18 = ssub.s32 %s12, 2
    %s28 = sadd.s32 1, %s21
    %p29 = scmp.ge.s32.totalorder %s28, 3
    %s30 = scalar_select %p29, 0, %s28
    %s31 = sadd.s32 1, %s20
    %s32 = scalar_select %p29, %s31, %s20
    %p33 = scmp.ge.s32.totalorder %s32, 1
    %s34 = scalar_select %p33, 0, %s32
    %s35 = sadd.s32 1, %s19
    %s36 = scalar_select %p33, %s35, %s19
    %p37 = scmp.ge.s32.totalorder %s36, 2
    %s38 = scalar_select %p37, 0, %s36
    %s39 = ssub.s32 %s19, %s38
    %s40 = ssub.s32 %s21, %s30
    %s41 = sor.u32 %s39, %s40
    %s42 = ssub.s32 %s20, %s34
    %s43 = sor.u32 %s41, %s42
    %p44 = scmp.eq.s32.totalorder %s43, 0
    %s46 = sadd.s32 %s45, 1
    %s47 = scalar_select %p44, %s45, %s46
    %p50 = pneg %p44
    %p51 = scmp.eq.s32.totalorder %s12, 5
    %p52 = por %p50, %p51
    %p53 = scmp.ne.s32.totalorder %s45, %s48
    %p54 = scmp.eq.s32.totalorder %s12, 0
    %p55 = por %p53, %p54
    %p56 = scmp.ne.s32.totalorder %s45, %s48
    %p57 = scmp.eq.s32.totalorder %s17, 5
    %p58 = por %p56, %p57
    %p59 = scmp.ne.s32.totalorder %s48, %s49
    %p60 = scmp.eq.s32.totalorder %s17, 0
    %p61 = por %p59, %p60
    %p62 = scmp.ne.s32.totalorder %s48, %s49
    %p63 = scmp.eq.s32.totalorder %s18, 5
    %p64 = por %p62, %p63
    %p66 = scmp.ne.s32.totalorder %s49, %s65
    %p67 = scmp.eq.s32.totalorder %s18, 0
    %p68 = por %p66, %p67
    %s69 = ssub.s32 %s19, %s38
    %s70 = ssub.s32 %s21, %s30
    %s71 = sor.u32 %s69, %s70
    %s72 = ssub.s32 %s20, %s34
    %s73 = sor.u32 %s71, %s72
    %p74 = scmp.eq.s32.totalorder %s73, 0
    %s76 = sadd.s32 %s75, 1
    %s77 = scalar_select %p74, %s75, %s76
    %p80 = pneg %p74
    %p81 = scmp.eq.s32.totalorder %s12, 5
    %p82 = por %p80, %p81
    %p83 = scmp.ne.s32.totalorder %s75, %s78
    %p84 = scmp.eq.s32.totalorder %s12, 0
    %p85 = por %p83, %p84
    %p86 = scmp.ne.s32.totalorder %s75, %s78
    %p87 = scmp.eq.s32.totalorder %s17, 5
    %p88 = por %p86, %p87
    %p89 = scmp.ne.s32.totalorder %s78, %s79
    %p90 = scmp.eq.s32.totalorder %s17, 0
    %p91 = por %p89, %p90
    %p92 = scmp.ne.s32.totalorder %s78, %s79
    %p93 = scmp.eq.s32.totalorder %s18, 5
    %p94 = por %p92, %p93
    %p96 = scmp.ne.s32.totalorder %s79, %s95
    %p97 = scmp.eq.s32.totalorder %s18, 0
    %p98 = por %p96, %p97
    %s99 = ssub.s32 %s19, %s38
    %s100 = ssub.s32 %s21, %s30
    %s101 = sor.u32 %s99, %s100
    %p102 = scmp.eq.s32.totalorder %s101, 0
    %s104 = sadd.s32 %s103, 1
    %s105 = scalar_select %p102, %s103, %s104
    %p108 = pneg %p102
    %p109 = scmp.eq.s32.totalorder %s12, 5
    %p110 = por %p108, %p109
    %p111 = scmp.ne.s32.totalorder %s103, %s106
    %p112 = scmp.eq.s32.totalorder %s12, 0
    %p113 = por %p111, %p112
    %p114 = scmp.ne.s32.totalorder %s103, %s106
    %p115 = scmp.eq.s32.totalorder %s17, 5
    %p116 = por %p114, %p115
    %p117 = scmp.ne.s32.totalorder %s106, %s107
    %p118 = scmp.eq.s32.totalorder %s17, 0
    %p119 = por %p117, %p118
    %p120 = scmp.ne.s32.totalorder %s106, %s107
    %p121 = scmp.eq.s32.totalorder %s18, 5
    %p122 = por %p120, %p121
    %p124 = scmp.ne.s32.totalorder %s107, %s123
    %p125 = scmp.eq.s32.totalorder %s18, 0
    %p126 = por %p124, %p125
    %s127 = ssub.s32 %s19, %s38
    %s128 = ssub.s32 %s21, %s30
    %s129 = sor.u32 %s127, %s128
    %p130 = scmp.eq.s32.totalorder %s129, 0
    %s132 = sadd.s32 %s131, 1
    %s133 = scalar_select %p130, %s131, %s132
    %p136 = pneg %p130
    %p137 = scmp.eq.s32.totalorder %s12, 5
    %p138 = por %p136, %p137
    %p139 = scmp.ne.s32.totalorder %s131, %s134
    %p140 = scmp.eq.s32.totalorder %s12, 0
    %p141 = por %p139, %p140
    %p142 = scmp.ne.s32.totalorder %s131, %s134
    %p143 = scmp.eq.s32.totalorder %s17, 5
    %p144 = por %p142, %p143
    %p145 = scmp.ne.s32.totalorder %s134, %s135
    %p146 = scmp.eq.s32.totalorder %s17, 0
    %p147 = por %p145, %p146
    %p148 = scmp.ne.s32.totalorder %s134, %s135
    %p149 = scmp.eq.s32.totalorder %s18, 5
    %p150 = por %p148, %p149
    %p152 = scmp.ne.s32.totalorder %s135, %s151
    %p153 = scmp.eq.s32.totalorder %s18, 0
    %p154 = por %p152, %p153
    %s155 = ssub.s32 %s20, %s34
    %p156 = scmp.eq.s32.totalorder %s155, 0
    %s158 = sadd.s32 %s157, 1
    %s159 = scalar_select %p156, %s157, %s158
    %p162 = pneg %p156
    %p163 = scmp.eq.s32.totalorder %s12, 5
    %p164 = por %p162, %p163
    %p165 = scmp.ne.s32.totalorder %s157, %s160
    %p166 = scmp.eq.s32.totalorder %s12, 0
    %p167 = por %p165, %p166
    %p168 = scmp.ne.s32.totalorder %s157, %s160
    %p169 = scmp.eq.s32.totalorder %s17, 5
    %p170 = por %p168, %p169
    %p171 = scmp.ne.s32.totalorder %s160, %s161
    %p172 = scmp.eq.s32.totalorder %s17, 0
    %p173 = por %p171, %p172
    %p174 = scmp.ne.s32.totalorder %s160, %s161
    %p175 = scmp.eq.s32.totalorder %s18, 5
    %p176 = por %p174, %p175
    %p178 = scmp.ne.s32.totalorder %s161, %s177
    %p179 = scmp.eq.s32.totalorder %s18, 0
    %p180 = por %p178, %p179
    %s181 = ssub.s32 %s20, %s34
    %p182 = scmp.eq.s32.totalorder %s181, 0
    %s184 = sadd.s32 %s183, 1
    %s185 = scalar_select %p182, %s183, %s184
    %p188 = pneg %p182
    %p189 = scmp.eq.s32.totalorder %s12, 5
    %p190 = por %p188, %p189
    %p191 = scmp.ne.s32.totalorder %s183, %s186
    %p192 = scmp.eq.s32.totalorder %s12, 0
    %p193 = por %p191, %p192
    %p194 = scmp.ne.s32.totalorder %s183, %s186
    %p195 = scmp.eq.s32.totalorder %s17, 5
    %p196 = por %p194, %p195
    %p197 = scmp.ne.s32.totalorder %s186, %s187
    %p198 = scmp.eq.s32.totalorder %s17, 0
    %p199 = por %p197, %p198
    %p200 = scmp.ne.s32.totalorder %s186, %s187
    %p201 = scmp.eq.s32.totalorder %s18, 5
    %p202 = por %p200, %p201
    %p204 = scmp.ne.s32.totalorder %s187, %s203
    %p205 = scmp.eq.s32.totalorder %s18, 0
    %p206 = por %p204, %p205
    %s207 = ssub.s32 %s19, %s38
    %s208 = ssub.s32 %s21, %s30
    %s209 = sor.u32 %s207, %s208
    %s210 = ssub.s32 %s20, %s34
    %s211 = sor.u32 %s209, %s210
    %p212 = scmp.eq.s32.totalorder %s211, 0
    %s214 = sadd.s32 %s213, 1
    %s215 = scalar_select %p212, %s213, %s214
    %p218 = pneg %p212
    %p219 = scmp.eq.s32.totalorder %s12, 5
    %p220 = por %p218, %p219
    %p221 = scmp.ne.s32.totalorder %s213, %s216
    %p222 = scmp.eq.s32.totalorder %s12, 0
    %p223 = por %p221, %p222
    %p224 = scmp.ne.s32.totalorder %s213, %s216
    %p225 = scmp.eq.s32.totalorder %s17, 5
    %p226 = por %p224, %p225
    %p227 = scmp.ne.s32.totalorder %s216, %s217
    %p228 = scmp.eq.s32.totalorder %s17, 0
    %p229 = por %p227, %p228
    %p230 = scmp.ne.s32.totalorder %s216, %s217
    %p231 = scmp.eq.s32.totalorder %s18, 5
    %p232 = por %p230, %p231
    %p234 = scmp.ne.s32.totalorder %s217, %s233
    %p235 = scmp.eq.s32.totalorder %s18, 0
    %p236 = por %p234, %p235
    %p237 = scmp.le.s32.totalorder 1, %s12
    %p238 = scmp.lt.s32.totalorder %s12, 7
    %p239 = pnand %p237, %p238
    %p240 = pneg %p239
    // Predicated region
    $region9: #{ssm2d_forward.3} parent=5 // pred_check
      _
    $region10: #{ssm2d_forward.3} parent=5 // pred_check_branch
      %242 = sbr.rel (%p239) target = $region12
    $region11: #{ssm2d_forward.3} parent=5 // pred_region
      %s243 = ssub.s32 %s12, 1
      // Predicated region
      $region13: #{ssm2d_forward.3} parent=11 // pred_check
        %p244 = pneg %p173
      $region14: #{ssm2d_forward.3} parent=11 // pred_check_branch
        %246 = sbr.rel (%p244) target = $region16
      $region15: #{ssm2d_forward.3} parent=11 // pred_region
        %p247 = scmp.lt.s32.totalorder %s23, 0
        %s248 = scalar_select %p247, %s23, 0
        %s249 = smul.addr %s248, 8
        %s250 = scalar_lea.vmem %s4, %s249
      $region16: #{ssm2d_forward.3} parent=11 // pred_fallthru
        _
      // Predicated region
      $region17: #{ssm2d_forward.3} parent=11 // pred_check
        %p251 = pneg %p199
      $region18: #{ssm2d_forward.3} parent=11 // pred_check_branch
        %253 = sbr.rel (%p251) target = $region20
      $region19: #{ssm2d_forward.3} parent=11 // pred_region
        %p254 = scmp.lt.s32.totalorder %s23, 0
        %s255 = scalar_select %p254, %s23, 0
        %s256 = scalar_lea.vmem %s5, %s255
      $region20: #{ssm2d_forward.3} parent=11 // pred_fallthru
        _
    $region12: #{ssm2d_forward.3} parent=5 // pred_fallthru
      _
    %p257 = scmp.lt.s32.totalorder %s12, 6
    // Predicated region
    $region21: #{ssm2d_forward.3} parent=5 // pred_check
      %p258 = pneg %p257
    $region22: #{ssm2d_forward.3} parent=5 // pred_check_branch
      %260 = sbr.rel (%p258) target = $region24
    $region23: #{ssm2d_forward.3} parent=5 // pred_region
      // Predicated region
      $region25: #{ssm2d_forward.3} parent=23 // pred_check
        %p261 = pneg %p55
      $region26: #{ssm2d_forward.3} parent=23 // pred_check_branch
        %263 = sbr.rel (%p261) target = $region28
      $region27: #{ssm2d_forward.3} parent=23 // pred_region
        %s264 = smul.u32 3, %s21
        %p265 = scmp.lt.s32.totalorder %s19, 1
        %s266 = scalar_select %p265, %s19, 1
        %p267 = scmp.lt.s32.totalorder %s264, 8
        %s268 = scalar_select %p267, %s264, 8
        %p269 = scmp.lt.s32.totalorder %s20, 0
        %s270 = scalar_select %p269, %s20, 0
        %s271 = sadd.s32 %s270, %s268
        %s272 = smul.addr %s266, 9
        %s273 = sadd.s32 %s271, %s272
        %s274 = smul.addr %s273, 8
        %s275 = scalar_lea.vmem %s0, %s274
        %s276 = smul.u32 3, %s21
      $region28: #{ssm2d_forward.3} parent=23 // pred_fallthru
        _
      // Predicated region
      $region29: #{ssm2d_forward.3} parent=23 // pred_check
        %p277 = pneg %p85
      $region30: #{ssm2d_forward.3} parent=23 // pred_check_branch
        %279 = sbr.rel (%p277) target = $region32
      $region31: #{ssm2d_forward.3} parent=23 // pred_region
        %s280 = smul.u32 3, %s21
        %p281 = scmp.lt.s32.totalorder %s19, 1
        %s282 = scalar_select %p281, %s19, 1
        %p283 = scmp.lt.s32.totalorder %s280, 8
        %s284 = scalar_select %p283, %s280, 8
        %p285 = scmp.lt.s32.totalorder %s20, 0
        %s286 = scalar_select %p285, %s20, 0
        %s287 = sadd.s32 %s286, %s284
        %s288 = smul.addr %s282, 9
        %s289 = sadd.s32 %s287, %s288
        %s290 = smul.addr %s289, 8
        %s291 = scalar_lea.vmem %s1, %s290
        %s292 = smul.u32 3, %s21
      $region32: #{ssm2d_forward.3} parent=23 // pred_fallthru
        _
      // Predicated region
      $region33: #{ssm2d_forward.3} parent=23 // pred_check
        %p293 = pneg %p113
      $region34: #{ssm2d_forward.3} parent=23 // pred_check_branch
        %295 = sbr.rel (%p293) target = $region36
      $region35: #{ssm2d_forward.3} parent=23 // pred_region
        %s296 = smul.u32 3, %s21
        %p297 = scmp.lt.s32.totalorder %s19, 1
        %s298 = scalar_select %p297, %s19, 1
        %p299 = scmp.lt.s32.totalorder %s296, 8
        %s300 = scalar_select %p299, %s296, 8
        %s301 = smul.addr %s298, 9
        %s302 = sadd.s32 %s300, %s301
        %s303 = smul.addr %s302, 8
        %s304 = scalar_lea.vmem %s2, %s303
        %s305 = smul.u32 3, %s21
      $region36: #{ssm2d_forward.3} parent=23 // pred_fallthru
        _
      // Predicated region
      $region37: #{ssm2d_forward.3} parent=23 // pred_check
        %p306 = pneg %p141
      $region38: #{ssm2d_forward.3} parent=23 // pred_check_branch
        %308 = sbr.rel (%p306) target = $region40
      $region39: #{ssm2d_forward.3} parent=23 // pred_region
        %s309 = smul.u32 3, %s21
        %p310 = scmp.lt.s32.totalorder %s19, 1
        %s311 = scalar_select %p310, %s19, 1
        %p312 = scmp.lt.s32.totalorder %s309, 8
        %s313 = scalar_select %p312, %s309, 8
        %s314 = smul.addr %s311, 9
        %s315 = sadd.s32 %s313, %s314
        %s316 = smul.addr %s315, 8
        %s317 = scalar_lea.vmem %s3, %s316
        %s318 = smul.u32 3, %s21
      $region40: #{ssm2d_forward.3} parent=23 // pred_fallthru
        _
    $region24: #{ssm2d_forward.3} parent=5 // pred_fallthru
      _
    %p319 = scmp.le.s32.totalorder 1, %s12
    %p320 = scmp.lt.s32.totalorder %s12, 7
    %p321 = pnand %p319, %p320
    %p322 = pneg %p321
    // Predicated region
    $region41: #{ssm2d_forward.3} parent=5 // pred_check
      _
    $region42: #{ssm2d_forward.3} parent=5 // pred_check_branch
      %324 = sbr.rel (%p321) target = $region44
    $region43: #{ssm2d_forward.3} parent=5 // pred_region
      %s325 = ssub.s32 %s12, 1
      %s326 = smul.u32 3, %s24
      %p327 = scmp.lt.s32.totalorder %s22, 1
      %s328 = scalar_select %p327, %s22, 1
      %p329 = scmp.lt.s32.totalorder %s326, 8
      %s330 = scalar_select %p329, %s326, 8
      %p331 = scmp.lt.s32.totalorder %s23, 0
      %s332 = scalar_select %p331, %s23, 0
      %s333 = sadd.s32 %s332, %s330
      %s334 = smul.addr %s328, 9
      %s335 = sadd.s32 %s333, %s334
      %s336 = smul.addr %s335, 8
      %s337 = scalar_lea.vmem %s0, %s336
      %p338 = pneg %p61
      %p339 = pneg %p58
      %s340 = smul.u32 3, %s24
      %p341 = scmp.lt.s32.totalorder %s22, 1
      %s342 = scalar_select %p341, %s22, 1
      %p343 = scmp.lt.s32.totalorder %s340, 8
      %s344 = scalar_select %p343, %s340, 8
      %p345 = scmp.lt.s32.totalorder %s23, 0
      %s346 = scalar_select %p345, %s23, 0
      %s347 = sadd.s32 %s346, %s344
      %s348 = smul.addr %s342, 9
      %s349 = sadd.s32 %s347, %s348
      %s350 = smul.addr %s349, 8
      %s351 = scalar_lea.vmem %s1, %s350
      %p352 = pneg %p91
      %p353 = pneg %p88
      %s354 = smul.u32 3, %s24
      %p355 = scmp.lt.s32.totalorder %s22, 1
      %s356 = scalar_select %p355, %s22, 1
      %p357 = scmp.lt.s32.totalorder %s354, 8
      %s358 = scalar_select %p357, %s354, 8
      %s359 = smul.addr %s356, 9
      %s360 = sadd.s32 %s358, %s359
      %s361 = smul.addr %s360, 8
      %s362 = scalar_lea.vmem %s2, %s361
      %p363 = pneg %p119
      %p364 = pneg %p116
      %s365 = smul.u32 3, %s24
      %p366 = scmp.lt.s32.totalorder %s22, 1
      %s367 = scalar_select %p366, %s22, 1
      %p368 = scmp.lt.s32.totalorder %s365, 8
      %s369 = scalar_select %p368, %s365, 8
      %s370 = smul.addr %s367, 9
      %s371 = sadd.s32 %s369, %s370
      %s372 = smul.addr %s371, 8
      %s373 = scalar_lea.vmem %s3, %s372
      %p374 = pneg %p147
      %p375 = pneg %p144
      %p376 = scmp.lt.s32.totalorder %s23, 0
      %s377 = scalar_select %p376, %s23, 0
      %s378 = smul.addr %s377, 8
      %s379 = scalar_lea.vmem %s4, %s378
      %p380 = pneg %p173
      %p381 = pneg %p170
      %p382 = scmp.lt.s32.totalorder %s23, 0
      %s383 = scalar_select %p382, %s23, 0
      %s384 = scalar_lea.vmem %s5, %s383
      %p385 = pneg %p199
      %p386 = pneg %p196
      %p387 = pneg %p229
      %p388 = pneg %p226
      %s389 = smul.u32 3, %s24
      %p390 = scmp.lt.s32.totalorder %s22, 1
      %s391 = scalar_select %p390, %s22, 1
      %p392 = scmp.lt.s32.totalorder %s389, 8
      %s393 = scalar_select %p392, %s389, 8
      %p394 = scmp.lt.s32.totalorder %s23, 0
      %s395 = scalar_select %p394, %s23, 0
      %s396 = sadd.s32 %s395, %s393
      %s397 = smul.addr %s391, 9
      %s398 = sadd.s32 %s396, %s397
      %s399 = smul.addr %s398, 8
      %s400 = scalar_lea.vmem %s6, %s399
      %s401 = smul.u32 3, %s24
      %p402 = scmp.lt.s32.totalorder %s22, 1
      %s403 = scalar_select %p402, %s22, 1
      %p404 = scmp.lt.s32.totalorder %s401, 8
      %s405 = scalar_select %p404, %s401, 8
      %p406 = scmp.lt.s32.totalorder %s23, 0
      %s407 = scalar_select %p406, %s23, 0
      %s408 = sadd.s32 %s407, %s405
      %s409 = smul.addr %s403, 9
      %s410 = sadd.s32 %s408, %s409
      %s411 = smul.addr %s410, 8
      %s412 = scalar_lea.vmem %s0, %s411
      %s413 = smul.u32 3, %s24
      %s414 = smul.u32 3, %s24
      %p415 = scmp.lt.s32.totalorder %s22, 1
      %s416 = scalar_select %p415, %s22, 1
      %p417 = scmp.lt.s32.totalorder %s414, 8
      %s418 = scalar_select %p417, %s414, 8
      %p419 = scmp.lt.s32.totalorder %s23, 0
      %s420 = scalar_select %p419, %s23, 0
      %s421 = sadd.s32 %s420, %s418
      %s422 = smul.addr %s416, 9
      %s423 = sadd.s32 %s421, %s422
      %s424 = smul.addr %s423, 8
      %s425 = scalar_lea.vmem %s1, %s424
      %s426 = smul.u32 3, %s24
      %s427 = smul.u32 3, %s24
      %p428 = scmp.lt.s32.totalorder %s22, 1
      %s429 = scalar_select %p428, %s22, 1
      %p430 = scmp.lt.s32.totalorder %s427, 8
      %s431 = scalar_select %p430, %s427, 8
      %s432 = smul.addr %s429, 9
      %s433 = sadd.s32 %s431, %s432
      %s434 = smul.addr %s433, 8
      %s435 = scalar_lea.vmem %s2, %s434
      %s436 = smul.u32 3, %s24
      %s437 = smul.u32 3, %s24
      %p438 = scmp.lt.s32.totalorder %s22, 1
      %s439 = scalar_select %p438, %s22, 1
      %p440 = scmp.lt.s32.totalorder %s437, 8
      %s441 = scalar_select %p440, %s437, 8
      %s442 = smul.addr %s439, 9
      %s443 = sadd.s32 %s441, %s442
      %s444 = smul.addr %s443, 8
      %s445 = scalar_lea.vmem %s3, %s444
      %s446 = smul.u32 3, %s24
      %p447 = scmp.lt.s32.totalorder %s23, 0
      %s448 = scalar_select %p447, %s23, 0
      %s449 = smul.addr %s448, 8
      %s450 = scalar_lea.vmem %s4, %s449
      %p451 = scmp.lt.s32.totalorder %s23, 0
      %s452 = scalar_select %p451, %s23, 0
      %s453 = scalar_lea.vmem %s5, %s452
      %s454 = smul.u32 3, %s24
      %p455 = scmp.lt.s32.totalorder %s22, 1
      %s456 = scalar_select %p455, %s22, 1
      %p457 = scmp.lt.s32.totalorder %s454, 8
      %s458 = scalar_select %p457, %s454, 8
      %p459 = scmp.lt.s32.totalorder %s23, 0
      %s460 = scalar_select %p459, %s23, 0
      %s461 = sadd.s32 %s460, %s458
      %s462 = smul.addr %s456, 9
      %s463 = sadd.s32 %s461, %s462
      %s464 = smul.addr %s463, 8
      %s465 = scalar_lea.vmem %s6, %s464
      %s466 = smul.u32 3, %s24
      %p467 = scmp.eq.s32.totalorder %s24, 0
      // Predicated region
      $region45: #{ssm2d_forward.3} parent=43 // pred_check
        %p468 = pneg %p467
      $region46: #{ssm2d_forward.3} parent=43 // pred_check_branch
        %470 = sbr.rel (%p468) target = $region48
      $region47: #{ssm2d_forward.3} parent=43 // pred_region
        %471 = vst [vmem:[#allocation2] sm:$0xff] 0.0
      $region48: #{ssm2d_forward.3} parent=43 // pred_fallthru
        _
      %v472 = vld [vmem:[%s450] sm:$0xff]
      %v473 = vld [vmem:[%s453] sm:$0x1]
      loop: start=0, step=1, limit=3
      $region49: #{ssm2d_forward.3} parent=43 // loop_pre_header
        _
      $region50: #{ssm2d_forward.3} parent=43 // loop_header
        %s475 = sphi 0, %s479
        %p476 = scmp.ge.s32.totalorder %s475, 3
      $region51: #{ssm2d_forward.3} parent=43 // loop_header_branch
        %478 = sbr.rel (%p476) target = $region55
      $region52: #{ssm2d_forward.3} parent=43 // loop_body
        %s480 = smul.u32 %s475, 8
        %s481 = scalar_lea.vmem %s425, %s480
        %v482 = vld [vmem:[%s481] sm:$0xff]
        %s483 = scalar_lea.vmem %s412, %s480
        %v484 = vld [vmem:[%s483] sm:$0xff]
        %s485 = scalar_lea.vmem %s435, %s480
        %v486 = vld [vmem:[%s485] sm:$0xff]
        %s487 = scalar_lea.vmem %s445, %s480
        %v488 = vld [vmem:[%s487] sm:$0xff]
        %v489 = vmul.f32 %v482, %v484
        %v491 = vrot.slane %v482, 1
        %v492 = vrot.slane %v482, 2
        %v493 = vrot.slane %v482, 3
        %v494 = vrot.slane %v482, 4
        %v495 = vrot.slane %v482, 5
        %v496 = vrot.slane %v482, 6
        %v497 = vrot.slane %v482, 7
        %v498 = vperm.slane %v482, 0
        %v499 = vperm.slane %v491, 0
        %v500 = vperm.slane %v492, 0
        %v501 = vperm.slane %v493, 0
        %v502 = vperm.slane %v494, 0
        %v503 = vperm.slane %v495, 0
        %v504 = vperm.slane %v496, 0
        %v505 = vperm.slane %v497, 0
        %v514 = vmul.f32 %v498, %v472
        %v515 = vmul.f32 %v499, %v472
        %v516 = vmul.f32 %v500, %v472
        %v517 = vmul.f32 %v501, %v472
        %v518 = vmul.f32 %v502, %v472
        %v519 = vmul.f32 %v503, %v472
        %v520 = vmul.f32 %v504, %v472
        %v521 = vmul.f32 %v505, %v472
        %v522 = vmul.f32 %v514, 1.442695
        %v523 = vpow.pop %v522
        %v524 = vmul.f32 %v515, 1.442695
        %v525 = vpow.pop %v524
        %v526 = vmul.f32 %v516, 1.442695
        %v527 = vpow.pop %v526
        %v528 = vmul.f32 %v517, 1.442695
        %v529 = vpow.pop %v528
        %v530 = vmul.f32 %v518, 1.442695
        %v531 = vpow.pop %v530
        %v532 = vmul.f32 %v519, 1.442695
        %v533 = vpow.pop %v532
        %v534 = vmul.f32 %v520, 1.442695
        %v535 = vpow.pop %v534
        %v536 = vmul.f32 %v521, 1.442695
        %v537 = vpow.pop %v536
        %v538 = vperm.slane %v486, 0
        %v539 = vlaneseq
        %v540 = vshrl.u32 %v539, 7
        %542 = vset.pattern.permute.xlu0 %v540
        %543 = vperm.xlu0 %542, %v538
        %v544 = vpop.permute.xlu0 %543
        %v545 = vperm.slane %v486, 1
        %v546 = vlaneseq
        %v547 = vshrl.u32 %v546, 7
        %549 = vset.pattern.permute.xlu0 %v547
        %550 = vperm.xlu0 %549, %v545
        %v551 = vpop.permute.xlu0 %550
        %v552 = vperm.slane %v486, 2
        %v553 = vlaneseq
        %v554 = vshrl.u32 %v553, 7
        %556 = vset.pattern.permute.xlu0 %v554
        %557 = vperm.xlu0 %556, %v552
        %v558 = vpop.permute.xlu0 %557
        %v559 = vperm.slane %v486, 3
        %v560 = vlaneseq
        %v561 = vshrl.u32 %v560, 7
        %563 = vset.pattern.permute.xlu0 %v561
        %564 = vperm.xlu0 %563, %v559
        %v565 = vpop.permute.xlu0 %564
        %v566 = vperm.slane %v486, 4
        %v567 = vlaneseq
        %v568 = vshrl.u32 %v567, 7
        %570 = vset.pattern.permute.xlu0 %v568
        %571 = vperm.xlu0 %570, %v566
        %v572 = vpop.permute.xlu0 %571
        %v573 = vperm.slane %v486, 5
        %v574 = vlaneseq
        %v575 = vshrl.u32 %v574, 7
        %577 = vset.pattern.permute.xlu0 %v575
        %578 = vperm.xlu0 %577, %v573
        %v579 = vpop.permute.xlu0 %578
        %v580 = vperm.slane %v486, 6
        %v581 = vlaneseq
        %v582 = vshrl.u32 %v581, 7
        %584 = vset.pattern.permute.xlu0 %v582
        %585 = vperm.xlu0 %584, %v580
        %v586 = vpop.permute.xlu0 %585
        %v587 = vperm.slane %v486, 7
        %v588 = vlaneseq
        %v589 = vshrl.u32 %v588, 7
        %591 = vset.pattern.permute.xlu0 %v589
        %592 = vperm.xlu0 %591, %v587
        %v593 = vpop.permute.xlu0 %592
        %v595 = vrot.slane %v489, 1
        %v596 = vrot.slane %v489, 2
        %v597 = vrot.slane %v489, 3
        %v598 = vrot.slane %v489, 4
        %v599 = vrot.slane %v489, 5
        %v600 = vrot.slane %v489, 6
        %v601 = vrot.slane %v489, 7
        %v602 = vperm.slane %v489, 0
        %v603 = vperm.slane %v595, 0
        %v604 = vperm.slane %v596, 0
        %v605 = vperm.slane %v597, 0
        %v606 = vperm.slane %v598, 0
        %v607 = vperm.slane %v599, 0
        %v608 = vperm.slane %v600, 0
        %v609 = vperm.slane %v601, 0
        %v618 = vmul.f32 %v544, %v602
        %v619 = vmul.f32 %v551, %v603
        %v620 = vmul.f32 %v558, %v604
        %v621 = vmul.f32 %v565, %v605
        %v622 = vmul.f32 %v572, %v606
        %v623 = vmul.f32 %v579, %v607
        %v624 = vmul.f32 %v586, %v608
        %v625 = vmul.f32 %v593, %v609
        %v626 = vld [vmem:[#allocation2] sm:$0xff]
        %v627 = vmul.f32 %v523, %v626
        %v628 = vadd.f32 %v627, %v618
        %v629 = vmul.f32 %v525, %v628
        %v630 = vadd.f32 %v629, %v619
        %v631 = vmul.f32 %v527, %v630
        %v632 = vadd.f32 %v631, %v620
        %v633 = vmul.f32 %v529, %v632
        %v634 = vadd.f32 %v633, %v621
        %v635 = vmul.f32 %v531, %v634
        %v636 = vadd.f32 %v635, %v622
        %v637 = vmul.f32 %v533, %v636
        %v638 = vadd.f32 %v637, %v623
        %v639 = vmul.f32 %v535, %v638
        %v640 = vadd.f32 %v639, %v624
        %v641 = vmul.f32 %v537, %v640
        %v642 = vadd.f32 %v641, %v625
        %643 = vst [vmem:[#allocation2] sm:$0xff] %v642
        %v644 = vperm.slane %v488, 0
        %v645 = vlaneseq
        %v646 = vshrl.u32 %v645, 7
        %648 = vset.pattern.permute.xlu0 %v646
        %649 = vperm.xlu0 %648, %v644
        %v650 = vpop.permute.xlu0 %649
        %v651 = vperm.slane %v488, 1
        %v652 = vlaneseq
        %v653 = vshrl.u32 %v652, 7
        %655 = vset.pattern.permute.xlu0 %v653
        %656 = vperm.xlu0 %655, %v651
        %v657 = vpop.permute.xlu0 %656
        %v658 = vperm.slane %v488, 2
        %v659 = vlaneseq
        %v660 = vshrl.u32 %v659, 7
        %662 = vset.pattern.permute.xlu0 %v660
        %663 = vperm.xlu0 %662, %v658
        %v664 = vpop.permute.xlu0 %663
        %v665 = vperm.slane %v488, 3
        %v666 = vlaneseq
        %v667 = vshrl.u32 %v666, 7
        %669 = vset.pattern.permute.xlu0 %v667
        %670 = vperm.xlu0 %669, %v665
        %v671 = vpop.permute.xlu0 %670
        %v672 = vperm.slane %v488, 4
        %v673 = vlaneseq
        %v674 = vshrl.u32 %v673, 7
        %676 = vset.pattern.permute.xlu0 %v674
        %677 = vperm.xlu0 %676, %v672
        %v678 = vpop.permute.xlu0 %677
        %v679 = vperm.slane %v488, 5
        %v680 = vlaneseq
        %v681 = vshrl.u32 %v680, 7
        %683 = vset.pattern.permute.xlu0 %v681
        %684 = vperm.xlu0 %683, %v679
        %v685 = vpop.permute.xlu0 %684
        %v686 = vperm.slane %v488, 6
        %v687 = vlaneseq
        %v688 = vshrl.u32 %v687, 7
        %690 = vset.pattern.permute.xlu0 %v688
        %691 = vperm.xlu0 %690, %v686
        %v692 = vpop.permute.xlu0 %691
        %v693 = vperm.slane %v488, 7
        %v694 = vlaneseq
        %v695 = vshrl.u32 %v694, 7
        %697 = vset.pattern.permute.xlu0 %v695
        %698 = vperm.xlu0 %697, %v693
        %v699 = vpop.permute.xlu0 %698
        %v700 = vmul.f32 %v650, %v628
        %v701 = vmul.f32 %v657, %v630
        %v702 = vmul.f32 %v664, %v632
        %v703 = vmul.f32 %v671, %v634
        %v704 = vmul.f32 %v678, %v636
        %v705 = vmul.f32 %v685, %v638
        %v706 = vmul.f32 %v692, %v640
        %v707 = vmul.f32 %v699, %v642
        %v708 = vrot.slane %v700, 4
        %v709 = vadd.f32 %v700, %v708
        %v710 = vrot.slane %v709, 2
        %v711 = vadd.f32 %v709, %v710
        %v712 = vrot.slane %v711, 1
        %v713 = vadd.f32 %v711, %v712
        %v714 = vrot.slane %v701, 4
        %v715 = vadd.f32 %v701, %v714
        %v716 = vrot.slane %v715, 2
        %v717 = vadd.f32 %v715, %v716
        %v718 = vrot.slane %v717, 1
        %v719 = vadd.f32 %v717, %v718
        %v720 = vrot.slane %v702, 4
        %v721 = vadd.f32 %v702, %v720
        %v722 = vrot.slane %v721, 2
        %v723 = vadd.f32 %v721, %v722
        %v724 = vrot.slane %v723, 1
        %v725 = vadd.f32 %v723, %v724
        %v726 = vrot.slane %v703, 4
        %v727 = vadd.f32 %v703, %v726
        %v728 = vrot.slane %v727, 2
        %v729 = vadd.f32 %v727, %v728
        %v730 = vrot.slane %v729, 1
        %v731 = vadd.f32 %v729, %v730
        %v732 = vrot.slane %v704, 4
        %v733 = vadd.f32 %v704, %v732
        %v734 = vrot.slane %v733, 2
        %v735 = vadd.f32 %v733, %v734
        %v736 = vrot.slane %v735, 1
        %v737 = vadd.f32 %v735, %v736
        %v738 = vrot.slane %v705, 4
        %v739 = vadd.f32 %v705, %v738
        %v740 = vrot.slane %v739, 2
        %v741 = vadd.f32 %v739, %v740
        %v742 = vrot.slane %v741, 1
        %v743 = vadd.f32 %v741, %v742
        %v744 = vrot.slane %v706, 4
        %v745 = vadd.f32 %v706, %v744
        %v746 = vrot.slane %v745, 2
        %v747 = vadd.f32 %v745, %v746
        %v748 = vrot.slane %v747, 1
        %v749 = vadd.f32 %v747, %v748
        %v750 = vrot.slane %v707, 4
        %v751 = vadd.f32 %v707, %v750
        %v752 = vrot.slane %v751, 2
        %v753 = vadd.f32 %v751, %v752
        %v754 = vrot.slane %v753, 1
        %v755 = vadd.f32 %v753, %v754
        %v757 = vperm.slane %v473, 0
        %v759 = vmul.f32 %v757, %v484
        %v761 = vrot.slane %v759, 1
        %v762 = vrot.slane %v759, 2
        %v763 = vrot.slane %v759, 3
        %v764 = vrot.slane %v759, 4
        %v765 = vrot.slane %v759, 5
        %v766 = vrot.slane %v759, 6
        %v767 = vrot.slane %v759, 7
        %v776 = vadd.f32 %v713, %v759
        %v777 = vadd.f32 %v719, %v761
        %v778 = vadd.f32 %v725, %v762
        %v779 = vadd.f32 %v731, %v763
        %v780 = vadd.f32 %v737, %v764
        %v781 = vadd.f32 %v743, %v765
        %v782 = vadd.f32 %v749, %v766
        %v783 = vadd.f32 %v755, %v767
        %v792 = vrot.slane %v777, 7
        %vm793 = vcmask 1041409
        %v794 = vsel %vm793, %v792, %v776
        %v795 = vrot.slane %v778, 6
        %vm796 = vcmask 1042434
        %v797 = vsel %vm796, %v795, %v794
        %v798 = vrot.slane %v779, 5
        %vm799 = vcmask 1043459
        %v800 = vsel %vm799, %v798, %v797
        %v801 = vrot.slane %v780, 4
        %vm802 = vcmask 1044484
        %v803 = vsel %vm802, %v801, %v800
        %v804 = vrot.slane %v781, 3
        %vm805 = vcmask 1045509
        %v806 = vsel %vm805, %v804, %v803
        %v807 = vrot.slane %v782, 2
        %vm808 = vcmask 1046534
        %v809 = vsel %vm808, %v807, %v806
        %v810 = vrot.slane %v783, 1
        %vm811 = vcmask 1047559
        %v812 = vsel %vm811, %v810, %v809
        %s814 = scalar_lea.vmem %s465, %s480
        %815 = vst [vmem:[%s814] sm:$0xff] %v812
      $region53: #{ssm2d_forward.3} parent=43 // loop_footer
        %s479 = sadd.s32 1, %s475
      $region54: #{ssm2d_forward.3} parent=43 // loop_footer_branch
        %474 = sbr.rel target = $region50
      $region55: #{ssm2d_forward.3} parent=43 // loop_exit
        _
      %s816 = smul.u32 3, %s24
      %p817 = scmp.lt.s32.totalorder %s22, 1
      %s818 = scalar_select %p817, %s22, 1
      %p819 = scmp.lt.s32.totalorder %s816, 8
      %s820 = scalar_select %p819, %s816, 8
      %p821 = scmp.lt.s32.totalorder %s23, 0
      %s822 = scalar_select %p821, %s23, 0
      %s823 = sadd.s32 %s822, %s820
      %s824 = smul.addr %s818, 9
      %s825 = sadd.s32 %s823, %s824
      %s826 = smul.addr %s825, 8
      %s827 = scalar_lea.vmem %s6, %s826
      // Predicated region
      $region56: #{ssm2d_forward.3} parent=43 // pred_check
        %p828 = pneg %p226
      $region57: #{ssm2d_forward.3} parent=43 // pred_check_branch
        %830 = sbr.rel (%p828) target = $region59
      $region58: #{ssm2d_forward.3} parent=43 // pred_region
        %s831 = smul.u32 3, %s24
      $region59: #{ssm2d_forward.3} parent=43 // pred_fallthru
        _
    $region44: #{ssm2d_forward.3} parent=5 // pred_fallthru
      _
    %p832 = scmp.le.s32.totalorder 2, %s12
    // Predicated region
    $region60: #{ssm2d_forward.3} parent=5 // pred_check
      %p833 = pneg %p832
    $region61: #{ssm2d_forward.3} parent=5 // pred_check_branch
      %835 = sbr.rel (%p833) target = $region63
    $region62: #{ssm2d_forward.3} parent=5 // pred_region
      %s836 = ssub.s32 %s12, 2
      // Predicated region
      $region64: #{ssm2d_forward.3} parent=62 // pred_check
        %p837 = pneg %p232
      $region65: #{ssm2d_forward.3} parent=62 // pred_check_branch
        %839 = sbr.rel (%p837) target = $region67
      $region66: #{ssm2d_forward.3} parent=62 // pred_region
        %s840 = smul.u32 3, %s27
        %p841 = scmp.lt.s32.totalorder %s25, 1
        %s842 = scalar_select %p841, %s25, 1
        %p843 = scmp.lt.s32.totalorder %s840, 8
        %s844 = scalar_select %p843, %s840, 8
        %p845 = scmp.lt.s32.totalorder %s26, 0
        %s846 = scalar_select %p845, %s26, 0
        %s847 = sadd.s32 %s846, %s844
        %s848 = smul.addr %s842, 9
        %s849 = sadd.s32 %s847, %s848
        %s850 = smul.addr %s849, 8
        %s851 = scalar_lea.vmem %s6, %s850
      $region67: #{ssm2d_forward.3} parent=62 // pred_fallthru
        _
    $region63: #{ssm2d_forward.3} parent=5 // pred_fallthru
      _
  $region6: #{ssm2d_forward.3} parent=0 // loop_footer
    %s16 = sadd.s32 1, %s12
  $region7: #{ssm2d_forward.3} parent=0 // loop_footer_branch
    %11 = sbr.rel target = $region3
  $region8: #{ssm2d_forward.3} parent=0 // loop_exit
    _

</llo_original>
